<compile_context>
chip_gen: v6e
topology: v6e:2x2x1
jax: 0.10.0
libtpu: 0.0.40
codegen_flags: <defaults>
</compile_context>

<pallas_src>
import functools

import numpy as np
import jax
import jax.numpy as jnp
from jax.experimental import pallas as pl
from jax.experimental.pallas import tpu as pltpu

_EPS = 1e-5  # nn.GroupNorm default


def _per_image_mean(x3):
    # [TB, R, C] -> [TB, 1, 1] (lane reduce then sublane reduce, per image)
    return jnp.mean(jnp.mean(x3, axis=2, keepdims=True), axis=1, keepdims=True)


# ---------------------------------------------------------------------------
# Pallas kernel: everything after the input im2col, TB images per grid step.
# ---------------------------------------------------------------------------
def _encoder_kernel(p_ref,                               # [TB*P1, 16*Cin] bf16 im2col patches
                    w1_ref, b1_ref, g1_ref, be1_ref,     # conv1 + GroupNorm1 params
                    gsel_ref,                            # [16*P2, P1] bf16 0/1 tap gather (rows = t*P2+o)
                    w2c_ref, b2_ref, g2_ref, be2_ref,    # conv2 (K-concat layout) + GroupNorm2 params
                    poolw_ref,                           # [PP, P2] adaptive-avg-pool weights
                    wh_ref, bh_ref,                      # fused mu|logsigma 1x1 heads
                    out_ref):                            # [TB, PP, 2A]
    f32 = jnp.float32
    bf16 = jnp.bfloat16

    p1 = gsel_ref.shape[1]
    tb = out_ref.shape[0]
    c1 = w1_ref.shape[1]
    n_taps = w2c_ref.shape[0] // c1
    p2 = gsel_ref.shape[0] // n_taps
    c2 = w2c_ref.shape[1]
    pp = poolw_ref.shape[0]
    a2 = wh_ref.shape[1]

    # ---- input layer: Conv2d(k4,s2,p1) as ONE im2col matmul (batch folded into M)
    h1 = jnp.dot(p_ref[...], w1_ref[...], preferred_element_type=f32) + b1_ref[...]
    h1 = h1 * jax.nn.sigmoid(h1)                                        # SiLU
    h1 = h1.reshape(tb, p1, c1)                                         # per-image view (leading split)
    m1 = _per_image_mean(h1)
    d1 = h1 - m1
    v1 = _per_image_mean(d1 * d1)
    h1 = (d1 * jax.lax.rsqrt(v1 + _EPS) * g1_ref[...] + be1_ref[...]).astype(bf16)

    # ---- hidden layer: Conv2d(k4,s2,p1)
    # (1) one stacked 0/1 gather matmul: exact row selection of all 16 taps at once
    gsel_b = jnp.broadcast_to(gsel_ref[...][None], (tb, n_taps * p2, p1))
    gathered = jnp.einsum('bgp,bpc->bgc', gsel_b, h1,
                          preferred_element_type=f32).astype(bf16)      # [TB, 16*P2, C1], exact
    # (2) K-concat the taps along lanes, then ONE weight matmul (taps summed in the MXU)
    gcat = jnp.concatenate([gathered[:, t * p2:(t + 1) * p2, :] for t in range(n_taps)],
                           axis=2)                                      # [TB, P2, 16*C1]
    h2 = jnp.dot(gcat.reshape(tb * p2, n_taps * c1), w2c_ref[...],
                 preferred_element_type=f32) + b2_ref[...]              # [TB*P2, C2]
    h2 = h2 * jax.nn.sigmoid(h2)                                        # SiLU
    h2 = h2.reshape(tb, p2, c2)
    m2 = _per_image_mean(h2)
    d2 = h2 - m2
    v2 = _per_image_mean(d2 * d2)
    h2 = (d2 * jax.lax.rsqrt(v2 + _EPS) * g2_ref[...] + be2_ref[...]).astype(bf16)

    # ---- AdaptiveAvgPool2d as a constant-weight matmul
    poolw_b = jnp.broadcast_to(poolw_ref[...][None], (tb, pp, p2))
    pooled = jnp.einsum('bqo,boc->bqc', poolw_b, h2,
                        preferred_element_type=f32)                     # [TB, PP, C2]

    # ---- fused mu / logsigma heads (two 1x1 convs as one matmul), ReLU on second half
    wh_b = jnp.broadcast_to(wh_ref[...][None], (tb, c2, a2))
    out = jnp.einsum('bqc,bca->bqa', pooled.astype(bf16), wh_b,
                     preferred_element_type=f32) + bh_ref[...]          # [TB, PP, 2A]
    col = jax.lax.broadcasted_iota(jnp.int32, out.shape, 2)
    out = jnp.where(col >= a2 // 2, jnp.maximum(out, 0.0), out)
    out_ref[...] = out.astype(out_ref.dtype)


# ---------------------------------------------------------------------------
# Wrapper-side layout plumbing (no FLOPs of significance).
# ---------------------------------------------------------------------------
def _im2col_s2(x_nhwc, k=4, s=2, p=1):
    """k x k stride-s (pad p) patches -> [B, OH*OW, k*k*C], feature order (kh, kw, c)."""
    b, h, w, c = x_nhwc.shape
    oh = (h + 2 * p - k) // s + 1
    ow = (w + 2 * p - k) // s + 1
    xp = jnp.pad(x_nhwc, ((0, 0), (p, p), (p, p), (0, 0)))
    cols = []
    for kh in range(k):
        for kw in range(k):
            sub = xp[:, kh:kh + s * oh:s, kw:kw + s * ow:s, :]          # [B, OH, OW, C]
            cols.append(sub.reshape(b, oh * ow, c))
    return jnp.concatenate(cols, axis=-1)


def _conv_tap_select(h_in, w_in, k=4, s=2, p=1):
    """[k*k, OH*OW, H*W] 0/1 matrices: G[t, o, i]=1 iff output pos o, tap t reads input pos i.
    Taps landing in the zero-padding region are all-zero rows (i.e. contribute 0)."""
    oh = (h_in + 2 * p - k) // s + 1
    ow = (w_in + 2 * p - k) // s + 1
    g = np.zeros((k * k, oh * ow, h_in * w_in), np.float32)
    for kh in range(k):
        for kw in range(k):
            t = kh * k + kw
            for i in range(oh):
                r = i * s + kh - p
                if r < 0 or r >= h_in:
                    continue
                for j in range(ow):
                    c = j * s + kw - p
                    if 0 <= c < w_in:
                        g[t, i * ow + j, r * w_in + c] = 1.0
    return g


def _adaptive_pool_matrix(h_in, w_in, h_out, w_out):
    """[h_out*w_out, h_in*w_in] averaging weights matching nn.AdaptiveAvgPool2d."""
    m = np.zeros((h_out * w_out, h_in * w_in), np.float32)
    for i in range(h_out):
        r0, r1 = (i * h_in) // h_out, -((-(i + 1) * h_in) // h_out)
        for j in range(w_out):
            c0, c1 = (j * w_in) // w_out, -((-(j + 1) * w_in) // w_out)
            wgt = 1.0 / ((r1 - r0) * (c1 - c0))
            for r in range(r0, r1):
                for c in range(c0, c1):
                    m[i * w_out + j, r * w_in + c] = wgt
    return m


# ---------------------------------------------------------------------------
# Parameters (PyTorch layout) and kernel-layout packing.
# ---------------------------------------------------------------------------
def init_raw_params(key, img_shape, a_shape, chan_hidden=32, hidden_layers=1):
    """Parameters in PyTorch layout (OIHW conv weights, 1-D biases / GN affine)."""
    assert hidden_layers == 1  # TODO(synk): kernel is specialized to the module default hidden_layers=1
    c_in = img_shape[0]
    c1, c2, a = chan_hidden, chan_hidden * 2, a_shape[0]
    ks = jax.random.split(key, 12)

    def conv(kw, kb, co, ci, k):
        bound = 1.0 / np.sqrt(ci * k * k)
        return (jax.random.uniform(kw, (co, ci, k, k), jnp.float32, -bound, bound),
                jax.random.uniform(kb, (co,), jnp.float32, -bound, bound))

    conv1_w, conv1_b = conv(ks[0], ks[1], c1, c_in, 4)
    conv2_w, conv2_b = conv(ks[2], ks[3], c2, c1, 4)
    mu_w, mu_b = conv(ks[4], ks[5], a, c2, 1)
    ls_w, ls_b = conv(ks[6], ks[7], a, c2, 1)
    return dict(
        conv1_w=conv1_w, conv1_b=conv1_b,
        gn1_g=1.0 + 0.1 * jax.random.normal(ks[8], (c1,), jnp.float32),
        gn1_b=0.1 * jax.random.normal(ks[9], (c1,), jnp.float32),
        conv2_w=conv2_w, conv2_b=conv2_b,
        gn2_g=1.0 + 0.1 * jax.random.normal(ks[10], (c2,), jnp.float32),
        gn2_b=0.1 * jax.random.normal(ks[11], (c2,), jnp.float32),
        mu_w=mu_w, mu_b=mu_b, ls_w=ls_w, ls_b=ls_b)


def pack_params(raw, img_shape, a_shape):
    """Repack PyTorch-layout params into the kernel layout (bf16, pre-transposed) + constants."""
    c_in, h, w = img_shape
    a, ah, aw = a_shape
    c1 = raw["conv1_w"].shape[0]
    oh1, ow1 = h // 2, w // 2            # spatial after conv1 (k4, s2, p1)
    oh2, ow2 = oh1 // 2, ow1 // 2        # spatial after conv2
    p2 = oh2 * ow2
    bf = jnp.bfloat16
    row = lambda v: v[None, :].astype(jnp.float32)

    w1 = jnp.transpose(raw["conv1_w"], (2, 3, 1, 0)).reshape(16 * c_in, c1).astype(bf)
    # stacked 0/1 gather matrices, rows ordered (tap, output position)
    gsel = jnp.asarray(_conv_tap_select(oh1, ow1).reshape(16 * p2, oh1 * ow1), bf)
    # conv2 weights in K-concat layout: row (tap*C1 + c1) -> col c2
    w2c = jnp.transpose(raw["conv2_w"], (2, 3, 1, 0)).reshape(16 * c1, raw["conv2_w"].shape[0]).astype(bf)
    poolw = jnp.asarray(_adaptive_pool_matrix(oh2, ow2, ah, aw), bf)
    wh = jnp.concatenate([raw["mu_w"][:, :, 0, 0].T, raw["ls_w"][:, :, 0, 0].T], axis=1).astype(bf)
    bh = jnp.concatenate([raw["mu_b"], raw["ls_b"]])[None, :].astype(jnp.float32)
    return dict(
        w1=w1, b1=row(raw["conv1_b"]), g1=row(raw["gn1_g"]), be1=row(raw["gn1_b"]),
        gsel=gsel,
        w2c=w2c, b2=row(raw["conv2_b"]), g2=row(raw["gn2_g"]), be2=row(raw["gn2_b"]),
        poolw=poolw, wh=wh, bh=bh)


# ---------------------------------------------------------------------------
# Public forward.
# ---------------------------------------------------------------------------
@functools.partial(jax.jit, static_argnames=("a_hw",))
def conv_gaussian_encoder(x_nchw, kp, *, a_hw):
    """x_nchw: [B, Cin, H, W] float32.  Returns (mu, logsigma), each [B, A, aH, aW]."""
    b = x_nchw.shape[0]
    ah, aw = a_hw

    # NCHW -> NHWC + stride-2 im2col of the network input (layout plumbing only).
    x_nhwc = jnp.transpose(x_nchw, (0, 2, 3, 1))
    patches = _im2col_s2(x_nhwc).astype(jnp.bfloat16)                   # [B, P1, 16*Cin]
    p1, k1 = patches.shape[1], patches.shape[2]

    # Batch tiling: few big grid steps.  >=2 steps so both v7x TensorCores get work;
    # on 1-TC chips (v5e/v6e) the single extra step costs ~0.35us.  Weights stay
    # VMEM resident across steps (constant index maps).
    n_steps = min(b, 2)
    tb = -(-b // n_steps)
    b_pad = n_steps * tb
    if b_pad != b:
        patches = jnp.pad(patches, ((0, b_pad - b), (0, 0), (0, 0)))
    patches = patches.reshape(b_pad * p1, k1)

    c1 = kp["w1"].shape[1]
    c2 = kp["w2c"].shape[1]
    n_taps = kp["w2c"].shape[0] // c1
    p2 = kp["gsel"].shape[0] // n_taps
    pp = kp["poolw"].shape[0]
    a2 = kp["wh"].shape[1]
    a = a2 // 2

    def full(arr):
        zeros = (0,) * arr.ndim
        return pl.BlockSpec(arr.shape, lambda i, z=zeros: z)

    flops = b_pad * 2 * (p1 * k1 * c1 + n_taps * p2 * p1 * c1
                         + p2 * n_taps * c1 * c2 + pp * p2 * c2 + pp * c2 * a2)
    transcendentals = b_pad * (p1 * c1 + p2 * c2 + 4)
    bytes_accessed = int(patches.size * patches.dtype.itemsize
                         + sum(int(np.prod(v.shape)) * v.dtype.itemsize for v in kp.values())
                         + b_pad * pp * a2 * 4)

    out = pl.pallas_call(
        _encoder_kernel,
        grid=(n_steps,),
        in_specs=[pl.BlockSpec((tb * p1, k1), lambda i: (i, 0)),
                  full(kp["w1"]), full(kp["b1"]), full(kp["g1"]), full(kp["be1"]),
                  full(kp["gsel"]),
                  full(kp["w2c"]), full(kp["b2"]), full(kp["g2"]), full(kp["be2"]),
                  full(kp["poolw"]), full(kp["wh"]), full(kp["bh"])],
        out_specs=pl.BlockSpec((tb, pp, a2), lambda i: (i, 0, 0)),
        out_shape=jax.ShapeDtypeStruct((b_pad, pp, a2), jnp.float32),
        compiler_params=pltpu.CompilerParams(dimension_semantics=("parallel",)),
        cost_estimate=pl.CostEstimate(flops=int(flops),
                                      transcendentals=int(transcendentals),
                                      bytes_accessed=bytes_accessed),
    )(patches,
      kp["w1"], kp["b1"], kp["g1"], kp["be1"],
      kp["gsel"],
      kp["w2c"], kp["b2"], kp["g2"], kp["be2"],
      kp["poolw"], kp["wh"], kp["bh"])

    # [B_pad, PP, 2A] -> NCHW outputs (layout plumbing).
    out = out[:b]
    out = jnp.transpose(out, (0, 2, 1)).reshape(b, a2, ah, aw)
    return out[:, :a], out[:, a:]


# ---------------------------------------------------------------------------
# Pure-JAX reference (independent of the kernel machinery).
# ---------------------------------------------------------------------------
def reference_forward(x, raw, a_shape):
    hi = jax.lax.Precision.HIGHEST

    def conv(y, w, bias):
        y = jax.lax.conv_general_dilated(y, w, (2, 2), ((1, 1), (1, 1)),
                                         dimension_numbers=("NCHW", "OIHW", "NCHW"),
                                         precision=hi)
        return y + bias[None, :, None, None]

    def gn(y, g, bias):
        m = jnp.mean(y, axis=(1, 2, 3), keepdims=True)
        v = jnp.mean((y - m) ** 2, axis=(1, 2, 3), keepdims=True)
        return (y - m) * jax.lax.rsqrt(v + _EPS) * g[None, :, None, None] + bias[None, :, None, None]

    silu = lambda y: y * jax.nn.sigmoid(y)

    y = gn(silu(conv(x, raw["conv1_w"], raw["conv1_b"])), raw["gn1_g"], raw["gn1_b"])
    y = gn(silu(conv(y, raw["conv2_w"], raw["conv2_b"])), raw["gn2_g"], raw["gn2_b"])
    a, ah, aw = a_shape
    bsz, c, h, w = y.shape
    y = y.reshape(bsz, c, ah, h // ah, aw, w // aw).mean(axis=(3, 5))   # adaptive avg pool (even split)
    mu = jnp.einsum("oc,bchw->bohw", raw["mu_w"][:, :, 0, 0], y, precision=hi) \
        + raw["mu_b"][None, :, None, None]
    ls = jnp.einsum("oc,bchw->bohw", raw["ls_w"][:, :, 0, 0], y, precision=hi) \
        + raw["ls_b"][None, :, None, None]
    return mu, jnp.maximum(ls, 0.0)


if __name__ == "__main__":
    img_shape = (4, 16, 16)      # [chan, dim_x, dim_y]
    a_shape = (8, 2, 2)
    batch = 2

    key = jax.random.PRNGKey(0)
    kx, kparam = jax.random.split(key)
    x = jax.random.normal(kx, (batch,) + img_shape, jnp.float32)

    raw = init_raw_params(kparam, img_shape, a_shape, chan_hidden=32, hidden_layers=1)
    packed = pack_params(raw, img_shape, a_shape)

    mu, logsigma = conv_gaussian_encoder(x, packed, a_hw=(a_shape[1], a_shape[2]))
    jax.block_until_ready((mu, logsigma))

    mu_ref, ls_ref = reference_forward(x, raw, a_shape)
    assert mu.shape == (batch, a_shape[0], a_shape[1], a_shape[2])
    assert logsigma.shape == mu.shape
    # bf16 matmul operands (f32 accumulation) vs HIGHEST-precision reference -> relaxed tolerance.
    assert jnp.allclose(mu, mu_ref, atol=3e-2, rtol=3e-2), float(jnp.max(jnp.abs(mu - mu_ref)))
    assert jnp.allclose(logsigma, ls_ref, atol=3e-2, rtol=3e-2), float(jnp.max(jnp.abs(logsigma - ls_ref)))
    assert jnp.all(logsigma >= 0.0)

    print("KERNEL_OK")
</pallas_src>

<mosaic_0001>
module attributes {stable_mosaic.version = 11 : i64} {
  func.func @_encoder_kernel(%arg0: i32, %arg1: memref<64x64xbf16, #tpu.memory_space<vmem>>, %arg2: memref<64x32xbf16, #tpu.memory_space<vmem>>, %arg3: memref<1x32xf32, #tpu.memory_space<vmem>>, %arg4: memref<1x32xf32, #tpu.memory_space<vmem>>, %arg5: memref<1x32xf32, #tpu.memory_space<vmem>>, %arg6: memref<256x64xbf16, #tpu.memory_space<vmem>>, %arg7: memref<512x64xbf16, #tpu.memory_space<vmem>>, %arg8: memref<1x64xf32, #tpu.memory_space<vmem>>, %arg9: memref<1x64xf32, #tpu.memory_space<vmem>>, %arg10: memref<1x64xf32, #tpu.memory_space<vmem>>, %arg11: memref<4x16xbf16, #tpu.memory_space<vmem>>, %arg12: memref<64x16xbf16, #tpu.memory_space<vmem>>, %arg13: memref<1x16xf32, #tpu.memory_space<vmem>>, %arg14: memref<1x4x16xf32, #tpu.memory_space<vmem>>) attributes {dimension_semantics = [#tpu.dimension_semantics<parallel>], iteration_bounds = array<i64: 2>, scalar_prefetch = 0 : i64, scratch_operands = 0 : i64, tpu.core_type = #tpu.core_type<tc>, window_params = [{transform_indices = @transform_0, window_bounds = array<i64: 64, 64>}, {pipeline_mode = #tpu.pipeline_mode<synchronous>, transform_indices = @transform_1, window_bounds = array<i64: 64, 32>}, {pipeline_mode = #tpu.pipeline_mode<synchronous>, transform_indices = @transform_2, window_bounds = array<i64: 1, 32>}, {pipeline_mode = #tpu.pipeline_mode<synchronous>, transform_indices = @transform_3, window_bounds = array<i64: 1, 32>}, {pipeline_mode = #tpu.pipeline_mode<synchronous>, transform_indices = @transform_4, window_bounds = array<i64: 1, 32>}, {pipeline_mode = #tpu.pipeline_mode<synchronous>, transform_indices = @transform_5, window_bounds = array<i64: 256, 64>}, {pipeline_mode = #tpu.pipeline_mode<synchronous>, transform_indices = @transform_6, window_bounds = array<i64: 512, 64>}, {pipeline_mode = #tpu.pipeline_mode<synchronous>, transform_indices = @transform_7, window_bounds = array<i64: 1, 64>}, {pipeline_mode = #tpu.pipeline_mode<synchronous>, transform_indices = @transform_8, window_bounds = array<i64: 1, 64>}, {pipeline_mode = #tpu.pipeline_mode<synchronous>, transform_indices = @transform_9, window_bounds = array<i64: 1, 64>}, {pipeline_mode = #tpu.pipeline_mode<synchronous>, transform_indices = @transform_10, window_bounds = array<i64: 4, 16>}, {pipeline_mode = #tpu.pipeline_mode<synchronous>, transform_indices = @transform_11, window_bounds = array<i64: 64, 16>}, {pipeline_mode = #tpu.pipeline_mode<synchronous>, transform_indices = @transform_12, window_bounds = array<i64: 1, 16>}, {transform_indices = @transform_13, window_bounds = array<i64: 1, 4, 16>}]} {
    %c0 = arith.constant 0 : index
    %c0_0 = arith.constant 0 : index
    %0 = vector.load %arg1[%c0, %c0_0] : memref<64x64xbf16, #tpu.memory_space<vmem>>, vector<64x64xbf16>
    %c0_1 = arith.constant 0 : index
    %c0_2 = arith.constant 0 : index
    %1 = vector.load %arg2[%c0_1, %c0_2] : memref<64x32xbf16, #tpu.memory_space<vmem>>, vector<64x32xbf16>
    %cst = arith.constant dense<0.000000e+00> : vector<64x32xf32>
    %2 = tpu.matmul %0, %1, %cst {dimension_numbers = #tpu.dot_dimension_numbers<[1], [0], [0], [1], [0, 0, 1, 1], [], []>} : vector<64x64xbf16>, vector<64x32xbf16>, vector<64x32xf32> -> vector<64x32xf32>
    %c0_3 = arith.constant 0 : index
    %c0_4 = arith.constant 0 : index
    %3 = vector.load %arg3[%c0_3, %c0_4] : memref<1x32xf32, #tpu.memory_space<vmem>>, vector<1x32xf32>
    %4 = vector.broadcast %3 : vector<1x32xf32> to vector<64x32xf32>
    %5 = arith.addf %2, %4 : vector<64x32xf32>
    %6 = arith.negf %5 : vector<64x32xf32>
    %7 = math.exp %6 : vector<64x32xf32>
    %cst_5 = arith.constant 1.000000e+00 : f32
    %8 = vector.broadcast %cst_5 : f32 to vector<64x32xf32>
    %9 = arith.addf %8, %7 : vector<64x32xf32>
    %10 = arith.divf %8, %9 : vector<64x32xf32>
    %11 = arith.mulf %5, %10 : vector<64x32xf32>
    %12 = vector.shape_cast %11 : vector<64x32xf32> to vector<1x64x32xf32>
    %cst_6 = arith.constant dense<0.000000e+00> : vector<1x64xf32>
    %13 = vector.multi_reduction <add>, %12, %cst_6 [2] : vector<1x64x32xf32> to vector<1x64xf32>
    %14 = vector.shape_cast %13 : vector<1x64xf32> to vector<1x64x1xf32>
    %cst_7 = arith.constant 3.200000e+01 : f32
    %15 = vector.broadcast %cst_7 : f32 to vector<1x64x1xf32>
    %16 = arith.divf %14, %15 : vector<1x64x1xf32>
    %cst_8 = arith.constant dense<0.000000e+00> : vector<1x1xf32>
    %17 = vector.multi_reduction <add>, %16, %cst_8 [1] : vector<1x64x1xf32> to vector<1x1xf32>
    %18 = vector.shape_cast %17 : vector<1x1xf32> to vector<1x1x1xf32>
    %cst_9 = arith.constant 6.400000e+01 : f32
    %19 = vector.broadcast %cst_9 : f32 to vector<1x1x1xf32>
    %20 = arith.divf %18, %19 : vector<1x1x1xf32>
    %21 = vector.broadcast %20 : vector<1x1x1xf32> to vector<1x64x32xf32>
    %22 = arith.subf %12, %21 : vector<1x64x32xf32>
    %23 = arith.mulf %22, %22 : vector<1x64x32xf32>
    %cst_10 = arith.constant dense<0.000000e+00> : vector<1x64xf32>
    %24 = vector.multi_reduction <add>, %23, %cst_10 [2] : vector<1x64x32xf32> to vector<1x64xf32>
    %25 = vector.shape_cast %24 : vector<1x64xf32> to vector<1x64x1xf32>
    %cst_11 = arith.constant 3.200000e+01 : f32
    %26 = vector.broadcast %cst_11 : f32 to vector<1x64x1xf32>
    %27 = arith.divf %25, %26 : vector<1x64x1xf32>
    %cst_12 = arith.constant dense<0.000000e+00> : vector<1x1xf32>
    %28 = vector.multi_reduction <add>, %27, %cst_12 [1] : vector<1x64x1xf32> to vector<1x1xf32>
    %29 = vector.shape_cast %28 : vector<1x1xf32> to vector<1x1x1xf32>
    %cst_13 = arith.constant 6.400000e+01 : f32
    %30 = vector.broadcast %cst_13 : f32 to vector<1x1x1xf32>
    %31 = arith.divf %29, %30 : vector<1x1x1xf32>
    %cst_14 = arith.constant 9.99999974E-6 : f32
    %32 = vector.broadcast %cst_14 : f32 to vector<1x1x1xf32>
    %33 = arith.addf %31, %32 : vector<1x1x1xf32>
    %34 = math.rsqrt %33 : vector<1x1x1xf32>
    %35 = vector.broadcast %34 : vector<1x1x1xf32> to vector<1x64x32xf32>
    %36 = arith.mulf %22, %35 : vector<1x64x32xf32>
    %c0_15 = arith.constant 0 : index
    %c0_16 = arith.constant 0 : index
    %37 = vector.load %arg4[%c0_15, %c0_16] : memref<1x32xf32, #tpu.memory_space<vmem>>, vector<1x32xf32>
    %38 = vector.shape_cast %37 : vector<1x32xf32> to vector<1x1x32xf32>
    %39 = vector.broadcast %38 : vector<1x1x32xf32> to vector<1x64x32xf32>
    %40 = arith.mulf %36, %39 : vector<1x64x32xf32>
    %c0_17 = arith.constant 0 : index
    %c0_18 = arith.constant 0 : index
    %41 = vector.load %arg5[%c0_17, %c0_18] : memref<1x32xf32, #tpu.memory_space<vmem>>, vector<1x32xf32>
    %42 = vector.shape_cast %41 : vector<1x32xf32> to vector<1x1x32xf32>
    %43 = vector.broadcast %42 : vector<1x1x32xf32> to vector<1x64x32xf32>
    %44 = arith.addf %40, %43 : vector<1x64x32xf32>
    %45 = arith.truncf %44 : vector<1x64x32xf32> to vector<1x64x32xbf16>
    %c0_19 = arith.constant 0 : index
    %c0_20 = arith.constant 0 : index
    %46 = vector.load %arg6[%c0_19, %c0_20] : memref<256x64xbf16, #tpu.memory_space<vmem>>, vector<256x64xbf16>
    %47 = vector.shape_cast %46 : vector<256x64xbf16> to vector<1x256x64xbf16>
    "tpu.trace_start"() <{level = 10 : i32, message = "bgp,bpc->bgc"}> : () -> ()
    %cst_21 = arith.constant dense<0.000000e+00> : vector<1x256x32xf32>
    %48 = tpu.matmul %47, %45, %cst_21 {dimension_numbers = #tpu.dot_dimension_numbers<[2], [1], [1], [2], [0, 0, 0, 1, 1, 2], [0], [0]>} : vector<1x256x64xbf16>, vector<1x64x32xbf16>, vector<1x256x32xf32> -> vector<1x256x32xf32>
    "tpu.trace_stop"() : () -> ()
    %49 = arith.truncf %48 : vector<1x256x32xf32> to vector<1x256x32xbf16>
    %50 = vector.extract_strided_slice %49 {offsets = [0, 0, 0], sizes = [1, 16, 32], strides = [1, 1, 1]} : vector<1x256x32xbf16> to vector<1x16x32xbf16>
    %51 = vector.extract_strided_slice %49 {offsets = [0, 16, 0], sizes = [1, 16, 32], strides = [1, 1, 1]} : vector<1x256x32xbf16> to vector<1x16x32xbf16>
    %52 = vector.extract_strided_slice %49 {offsets = [0, 32, 0], sizes = [1, 16, 32], strides = [1, 1, 1]} : vector<1x256x32xbf16> to vector<1x16x32xbf16>
    %53 = vector.extract_strided_slice %49 {offsets = [0, 48, 0], sizes = [1, 16, 32], strides = [1, 1, 1]} : vector<1x256x32xbf16> to vector<1x16x32xbf16>
    %54 = vector.extract_strided_slice %49 {offsets = [0, 64, 0], sizes = [1, 16, 32], strides = [1, 1, 1]} : vector<1x256x32xbf16> to vector<1x16x32xbf16>
    %55 = vector.extract_strided_slice %49 {offsets = [0, 80, 0], sizes = [1, 16, 32], strides = [1, 1, 1]} : vector<1x256x32xbf16> to vector<1x16x32xbf16>
    %56 = vector.extract_strided_slice %49 {offsets = [0, 96, 0], sizes = [1, 16, 32], strides = [1, 1, 1]} : vector<1x256x32xbf16> to vector<1x16x32xbf16>
    %57 = vector.extract_strided_slice %49 {offsets = [0, 112, 0], sizes = [1, 16, 32], strides = [1, 1, 1]} : vector<1x256x32xbf16> to vector<1x16x32xbf16>
    %58 = vector.extract_strided_slice %49 {offsets = [0, 128, 0], sizes = [1, 16, 32], strides = [1, 1, 1]} : vector<1x256x32xbf16> to vector<1x16x32xbf16>
    %59 = vector.extract_strided_slice %49 {offsets = [0, 144, 0], sizes = [1, 16, 32], strides = [1, 1, 1]} : vector<1x256x32xbf16> to vector<1x16x32xbf16>
    %60 = vector.extract_strided_slice %49 {offsets = [0, 160, 0], sizes = [1, 16, 32], strides = [1, 1, 1]} : vector<1x256x32xbf16> to vector<1x16x32xbf16>
    %61 = vector.extract_strided_slice %49 {offsets = [0, 176, 0], sizes = [1, 16, 32], strides = [1, 1, 1]} : vector<1x256x32xbf16> to vector<1x16x32xbf16>
    %62 = vector.extract_strided_slice %49 {offsets = [0, 192, 0], sizes = [1, 16, 32], strides = [1, 1, 1]} : vector<1x256x32xbf16> to vector<1x16x32xbf16>
    %63 = vector.extract_strided_slice %49 {offsets = [0, 208, 0], sizes = [1, 16, 32], strides = [1, 1, 1]} : vector<1x256x32xbf16> to vector<1x16x32xbf16>
    %64 = vector.extract_strided_slice %49 {offsets = [0, 224, 0], sizes = [1, 16, 32], strides = [1, 1, 1]} : vector<1x256x32xbf16> to vector<1x16x32xbf16>
    %65 = vector.extract_strided_slice %49 {offsets = [0, 240, 0], sizes = [1, 16, 32], strides = [1, 1, 1]} : vector<1x256x32xbf16> to vector<1x16x32xbf16>
    %66 = tpu.concatenate %50, %51, %52, %53, %54, %55, %56, %57, %58, %59, %60, %61, %62, %63, %64, %65 in 2 : vector<1x16x32xbf16>, vector<1x16x32xbf16>, vector<1x16x32xbf16>, vector<1x16x32xbf16>, vector<1x16x32xbf16>, vector<1x16x32xbf16>, vector<1x16x32xbf16>, vector<1x16x32xbf16>, vector<1x16x32xbf16>, vector<1x16x32xbf16>, vector<1x16x32xbf16>, vector<1x16x32xbf16>, vector<1x16x32xbf16>, vector<1x16x32xbf16>, vector<1x16x32xbf16>, vector<1x16x32xbf16> -> vector<1x16x512xbf16>
    %67 = vector.shape_cast %66 : vector<1x16x512xbf16> to vector<16x512xbf16>
    %c0_22 = arith.constant 0 : index
    %c0_23 = arith.constant 0 : index
    %68 = vector.load %arg7[%c0_22, %c0_23] : memref<512x64xbf16, #tpu.memory_space<vmem>>, vector<512x64xbf16>
    %cst_24 = arith.constant dense<0.000000e+00> : vector<16x64xf32>
    %69 = tpu.matmul %67, %68, %cst_24 {dimension_numbers = #tpu.dot_dimension_numbers<[1], [0], [0], [1], [0, 0, 1, 1], [], []>} : vector<16x512xbf16>, vector<512x64xbf16>, vector<16x64xf32> -> vector<16x64xf32>
    %c0_25 = arith.constant 0 : index
    %c0_26 = arith.constant 0 : index
    %70 = vector.load %arg8[%c0_25, %c0_26] : memref<1x64xf32, #tpu.memory_space<vmem>>, vector<1x64xf32>
    %71 = vector.broadcast %70 : vector<1x64xf32> to vector<16x64xf32>
    %72 = arith.addf %69, %71 : vector<16x64xf32>
    %73 = arith.negf %72 : vector<16x64xf32>
    %74 = math.exp %73 : vector<16x64xf32>
    %cst_27 = arith.constant 1.000000e+00 : f32
    %75 = vector.broadcast %cst_27 : f32 to vector<16x64xf32>
    %76 = arith.addf %75, %74 : vector<16x64xf32>
    %77 = arith.divf %75, %76 : vector<16x64xf32>
    %78 = arith.mulf %72, %77 : vector<16x64xf32>
    %79 = vector.shape_cast %78 : vector<16x64xf32> to vector<1x16x64xf32>
    %cst_28 = arith.constant dense<0.000000e+00> : vector<1x16xf32>
    %80 = vector.multi_reduction <add>, %79, %cst_28 [2] : vector<1x16x64xf32> to vector<1x16xf32>
    %81 = vector.shape_cast %80 : vector<1x16xf32> to vector<1x16x1xf32>
    %cst_29 = arith.constant 6.400000e+01 : f32
    %82 = vector.broadcast %cst_29 : f32 to vector<1x16x1xf32>
    %83 = arith.divf %81, %82 : vector<1x16x1xf32>
    %cst_30 = arith.constant dense<0.000000e+00> : vector<1x1xf32>
    %84 = vector.multi_reduction <add>, %83, %cst_30 [1] : vector<1x16x1xf32> to vector<1x1xf32>
    %85 = vector.shape_cast %84 : vector<1x1xf32> to vector<1x1x1xf32>
    %cst_31 = arith.constant 1.600000e+01 : f32
    %86 = vector.broadcast %cst_31 : f32 to vector<1x1x1xf32>
    %87 = arith.divf %85, %86 : vector<1x1x1xf32>
    %88 = vector.broadcast %87 : vector<1x1x1xf32> to vector<1x16x64xf32>
    %89 = arith.subf %79, %88 : vector<1x16x64xf32>
    %90 = arith.mulf %89, %89 : vector<1x16x64xf32>
    %cst_32 = arith.constant dense<0.000000e+00> : vector<1x16xf32>
    %91 = vector.multi_reduction <add>, %90, %cst_32 [2] : vector<1x16x64xf32> to vector<1x16xf32>
    %92 = vector.shape_cast %91 : vector<1x16xf32> to vector<1x16x1xf32>
    %cst_33 = arith.constant 6.400000e+01 : f32
    %93 = vector.broadcast %cst_33 : f32 to vector<1x16x1xf32>
    %94 = arith.divf %92, %93 : vector<1x16x1xf32>
    %cst_34 = arith.constant dense<0.000000e+00> : vector<1x1xf32>
    %95 = vector.multi_reduction <add>, %94, %cst_34 [1] : vector<1x16x1xf32> to vector<1x1xf32>
    %96 = vector.shape_cast %95 : vector<1x1xf32> to vector<1x1x1xf32>
    %cst_35 = arith.constant 1.600000e+01 : f32
    %97 = vector.broadcast %cst_35 : f32 to vector<1x1x1xf32>
    %98 = arith.divf %96, %97 : vector<1x1x1xf32>
    %cst_36 = arith.constant 9.99999974E-6 : f32
    %99 = vector.broadcast %cst_36 : f32 to vector<1x1x1xf32>
    %100 = arith.addf %98, %99 : vector<1x1x1xf32>
    %101 = math.rsqrt %100 : vector<1x1x1xf32>
    %102 = vector.broadcast %101 : vector<1x1x1xf32> to vector<1x16x64xf32>
    %103 = arith.mulf %89, %102 : vector<1x16x64xf32>
    %c0_37 = arith.constant 0 : index
    %c0_38 = arith.constant 0 : index
    %104 = vector.load %arg9[%c0_37, %c0_38] : memref<1x64xf32, #tpu.memory_space<vmem>>, vector<1x64xf32>
    %105 = vector.shape_cast %104 : vector<1x64xf32> to vector<1x1x64xf32>
    %106 = vector.broadcast %105 : vector<1x1x64xf32> to vector<1x16x64xf32>
    %107 = arith.mulf %103, %106 : vector<1x16x64xf32>
    %c0_39 = arith.constant 0 : index
    %c0_40 = arith.constant 0 : index
    %108 = vector.load %arg10[%c0_39, %c0_40] : memref<1x64xf32, #tpu.memory_space<vmem>>, vector<1x64xf32>
    %109 = vector.shape_cast %108 : vector<1x64xf32> to vector<1x1x64xf32>
    %110 = vector.broadcast %109 : vector<1x1x64xf32> to vector<1x16x64xf32>
    %111 = arith.addf %107, %110 : vector<1x16x64xf32>
    %112 = arith.truncf %111 : vector<1x16x64xf32> to vector<1x16x64xbf16>
    %c0_41 = arith.constant 0 : index
    %c0_42 = arith.constant 0 : index
    %113 = vector.load %arg11[%c0_41, %c0_42] : memref<4x16xbf16, #tpu.memory_space<vmem>>, vector<4x16xbf16>
    %114 = vector.shape_cast %113 : vector<4x16xbf16> to vector<1x4x16xbf16>
    "tpu.trace_start"() <{level = 10 : i32, message = "bqo,boc->bqc"}> : () -> ()
    %cst_43 = arith.constant dense<0.000000e+00> : vector<1x4x64xf32>
    %115 = tpu.matmul %114, %112, %cst_43 {dimension_numbers = #tpu.dot_dimension_numbers<[2], [1], [1], [2], [0, 0, 0, 1, 1, 2], [0], [0]>} : vector<1x4x16xbf16>, vector<1x16x64xbf16>, vector<1x4x64xf32> -> vector<1x4x64xf32>
    "tpu.trace_stop"() : () -> ()
    %c0_44 = arith.constant 0 : index
    %c0_45 = arith.constant 0 : index
    %116 = vector.load %arg12[%c0_44, %c0_45] : memref<64x16xbf16, #tpu.memory_space<vmem>>, vector<64x16xbf16>
    %117 = vector.shape_cast %116 : vector<64x16xbf16> to vector<1x64x16xbf16>
    %118 = arith.truncf %115 : vector<1x4x64xf32> to vector<1x4x64xbf16>
    "tpu.trace_start"() <{level = 10 : i32, message = "bqc,bca->bqa"}> : () -> ()
    %cst_46 = arith.constant dense<0.000000e+00> : vector<1x4x16xf32>
    %119 = tpu.matmul %118, %117, %cst_46 {dimension_numbers = #tpu.dot_dimension_numbers<[2], [1], [1], [2], [0, 0, 0, 1, 1, 2], [0], [0]>} : vector<1x4x64xbf16>, vector<1x64x16xbf16>, vector<1x4x16xf32> -> vector<1x4x16xf32>
    "tpu.trace_stop"() : () -> ()
    %c0_47 = arith.constant 0 : index
    %c0_48 = arith.constant 0 : index
    %120 = vector.load %arg13[%c0_47, %c0_48] : memref<1x16xf32, #tpu.memory_space<vmem>>, vector<1x16xf32>
    %121 = vector.shape_cast %120 : vector<1x16xf32> to vector<1x1x16xf32>
    %122 = vector.broadcast %121 : vector<1x1x16xf32> to vector<1x4x16xf32>
    %123 = arith.addf %119, %122 : vector<1x4x16xf32>
    %124 = tpu.iota {dimensions = array<i32: 2>} : vector<1x4x16xi32>
    %c8_i32 = arith.constant 8 : i32
    %125 = vector.broadcast %c8_i32 : i32 to vector<1x4x16xi32>
    %126 = arith.cmpi sge, %124, %125 : vector<1x4x16xi32>
    %cst_49 = arith.constant 0.000000e+00 : f32
    %127 = vector.broadcast %cst_49 : f32 to vector<1x4x16xf32>
    %128 = arith.maximumf %123, %127 : vector<1x4x16xf32>
    %129 = arith.select %126, %128, %123 : vector<1x4x16xi1>, vector<1x4x16xf32>
    %c0_50 = arith.constant 0 : index
    %c0_51 = arith.constant 0 : index
    %c0_52 = arith.constant 0 : index
    %130 = vector.load %arg14[%c0_50, %c0_51, %c0_52] : memref<1x4x16xf32, #tpu.memory_space<vmem>>, vector<1x4x16xf32>
    tpu.vector_store %arg14[%c0_50, %c0_51, %c0_52], %129 {strides = array<i32>} : memref<1x4x16xf32, #tpu.memory_space<vmem>>, vector<1x4x16xf32>,
    return
  }
  func.func @transform_0(%arg0: i32) -> (i32, i32) {
    %c0_i32 = arith.constant 0 : i32
    %c0_i32_0 = arith.constant 0 : i32
    return %arg0, %c0_i32 : i32, i32
  }
  func.func @transform_1(%arg0: i32) -> (i32, i32) {
    %c0_i32 = arith.constant 0 : i32
    %c0_i32_0 = arith.constant 0 : i32
    %c0_i32_1 = arith.constant 0 : i32
    return %c0_i32, %c0_i32_0 : i32, i32
  }
  func.func @transform_2(%arg0: i32) -> (i32, i32) {
    %c0_i32 = arith.constant 0 : i32
    %c0_i32_0 = arith.constant 0 : i32
    %c0_i32_1 = arith.constant 0 : i32
    return %c0_i32, %c0_i32_0 : i32, i32
  }
  func.func @transform_3(%arg0: i32) -> (i32, i32) {
    %c0_i32 = arith.constant 0 : i32
    %c0_i32_0 = arith.constant 0 : i32
    %c0_i32_1 = arith.constant 0 : i32
    return %c0_i32, %c0_i32_0 : i32, i32
  }
  func.func @transform_4(%arg0: i32) -> (i32, i32) {
    %c0_i32 = arith.constant 0 : i32
    %c0_i32_0 = arith.constant 0 : i32
    %c0_i32_1 = arith.constant 0 : i32
    return %c0_i32, %c0_i32_0 : i32, i32
  }
  func.func @transform_5(%arg0: i32) -> (i32, i32) {
    %c0_i32 = arith.constant 0 : i32
    %c0_i32_0 = arith.constant 0 : i32
    %c0_i32_1 = arith.constant 0 : i32
    return %c0_i32, %c0_i32_0 : i32, i32
  }
  func.func @transform_6(%arg0: i32) -> (i32, i32) {
    %c0_i32 = arith.constant 0 : i32
    %c0_i32_0 = arith.constant 0 : i32
    %c0_i32_1 = arith.constant 0 : i32
    return %c0_i32, %c0_i32_0 : i32, i32
  }
  func.func @transform_7(%arg0: i32) -> (i32, i32) {
    %c0_i32 = arith.constant 0 : i32
    %c0_i32_0 = arith.constant 0 : i32
    %c0_i32_1 = arith.constant 0 : i32
    return %c0_i32, %c0_i32_0 : i32, i32
  }
  func.func @transform_8(%arg0: i32) -> (i32, i32) {
    %c0_i32 = arith.constant 0 : i32
    %c0_i32_0 = arith.constant 0 : i32
    %c0_i32_1 = arith.constant 0 : i32
    return %c0_i32, %c0_i32_0 : i32, i32
  }
  func.func @transform_9(%arg0: i32) -> (i32, i32) {
    %c0_i32 = arith.constant 0 : i32
    %c0_i32_0 = arith.constant 0 : i32
    %c0_i32_1 = arith.constant 0 : i32
    return %c0_i32, %c0_i32_0 : i32, i32
  }
  func.func @transform_10(%arg0: i32) -> (i32, i32) {
    %c0_i32 = arith.constant 0 : i32
    %c0_i32_0 = arith.constant 0 : i32
    %c0_i32_1 = arith.constant 0 : i32
    return %c0_i32, %c0_i32_0 : i32, i32
  }
  func.func @transform_11(%arg0: i32) -> (i32, i32) {
    %c0_i32 = arith.constant 0 : i32
    %c0_i32_0 = arith.constant 0 : i32
    %c0_i32_1 = arith.constant 0 : i32
    return %c0_i32, %c0_i32_0 : i32, i32
  }
  func.func @transform_12(%arg0: i32) -> (i32, i32) {
    %c0_i32 = arith.constant 0 : i32
    %c0_i32_0 = arith.constant 0 : i32
    %c0_i32_1 = arith.constant 0 : i32
    return %c0_i32, %c0_i32_0 : i32, i32
  }
  func.func @transform_13(%arg0: i32) -> (i32, i32, i32) {
    %c0_i32 = arith.constant 0 : i32
    %c0_i32_0 = arith.constant 0 : i32
    %c0_i32_1 = arith.constant 0 : i32
    return %arg0, %c0_i32, %c0_i32_0 : i32, i32, i32
  }
}

</mosaic_0001>

<llo_original>
// kernel: conv_gaussian_encoder.1
$region0: #{conv_gaussian_encoder.1}
  #allocation0 [shape = 'u32[]', space=smem, size = 0x4, offset = 0x4, fixed_abs, tag = 'smem constant byte address 0x4 - core index']
  #allocation1 [shape = 'u32[144,128]{1,0:T(1,128)}', space=vmem, size = 0x12000, scoped, tag = 'internal scratch']
  %s0 = inlined_call_operand.vmem [shape: bf16[128,64], index: 0, kind: input, shape index: {}]
  %s1 = inlined_call_operand.vmem [shape: bf16[64,32], index: 1, kind: input, shape index: {}]
  %s2 = inlined_call_operand.vmem [shape: f32[1,32], index: 2, kind: input, shape index: {}]
  %s3 = inlined_call_operand.vmem [shape: f32[1,32], index: 3, kind: input, shape index: {}]
  %s4 = inlined_call_operand.vmem [shape: f32[1,32], index: 4, kind: input, shape index: {}]
  %s5 = inlined_call_operand.vmem [shape: bf16[256,64], index: 5, kind: input, shape index: {}]
  %s6 = inlined_call_operand.vmem [shape: bf16[512,64], index: 6, kind: input, shape index: {}]
  %s7 = inlined_call_operand.vmem [shape: f32[1,64], index: 7, kind: input, shape index: {}]
  %s8 = inlined_call_operand.vmem [shape: f32[1,64], index: 8, kind: input, shape index: {}]
  %s9 = inlined_call_operand.vmem [shape: f32[1,64], index: 9, kind: input, shape index: {}]
  %s10 = inlined_call_operand.vmem [shape: bf16[4,16], index: 10, kind: input, shape index: {}]
  %s11 = inlined_call_operand.vmem [shape: bf16[64,16], index: 11, kind: input, shape index: {}]
  %s12 = inlined_call_operand.vmem [shape: f32[1,16], index: 12, kind: input, shape index: {}]
  %s13 = inlined_call_operand.vmem [shape: f32[2,4,16], index: 13, kind: output, shape index: {}]
  %s14 = sld [smem:[#allocation0]]
  $region85: #{conv_gaussian_encoder.1} parent=0
    _
  %s16 = ssub.s32 1, %s14
  %s17 = scalar_select 0, %s16, %s14
  loop: start=0, step=1, limit=4
  $region2: #{conv_gaussian_encoder.1} parent=0 // loop_pre_header
    _
  $region3: #{conv_gaussian_encoder.1} parent=0 // loop_header
    %s19 = sphi 0, %s23
    %p20 = scmp.ge.s32.totalorder %s19, 4
    %s29 = sphi 0, %s31
    %s32 = sphi 0, %s29
    %s33 = sphi 0, %s32
    %s49 = sphi 0, %s33
    %s53 = sphi 0, %s53
    %s55 = sphi 0, %s53
    %s56 = sphi 0, %s55
    %s70 = sphi 0, %s56
    %s74 = sphi 0, %s74
    %s76 = sphi 0, %s74
    %s77 = sphi 0, %s76
    %s91 = sphi 0, %s77
    %s95 = sphi 0, %s95
    %s97 = sphi 0, %s95
    %s98 = sphi 0, %s97
    %s112 = sphi 0, %s98
    %s116 = sphi 0, %s116
    %s118 = sphi 0, %s116
    %s119 = sphi 0, %s118
    %s133 = sphi 0, %s119
    %s137 = sphi 0, %s137
    %s139 = sphi 0, %s137
    %s140 = sphi 0, %s139
    %s154 = sphi 0, %s140
    %s158 = sphi 0, %s158
    %s160 = sphi 0, %s158
    %s161 = sphi 0, %s160
    %s175 = sphi 0, %s161
    %s179 = sphi 0, %s179
    %s181 = sphi 0, %s179
    %s182 = sphi 0, %s181
    %s196 = sphi 0, %s182
    %s200 = sphi 0, %s200
    %s202 = sphi 0, %s200
    %s203 = sphi 0, %s202
    %s217 = sphi 0, %s203
    %s221 = sphi 0, %s221
    %s223 = sphi 0, %s221
    %s224 = sphi 0, %s223
    %s238 = sphi 0, %s224
    %s242 = sphi 0, %s242
    %s244 = sphi 0, %s242
    %s245 = sphi 0, %s244
    %s259 = sphi 0, %s245
    %s263 = sphi 0, %s263
    %s265 = sphi 0, %s263
    %s266 = sphi 0, %s265
    %s280 = sphi 0, %s266
    %s284 = sphi 0, %s284
    %s286 = sphi 0, %s284
    %s287 = sphi 0, %s286
    %s301 = sphi 0, %s287
    %s307 = sphi 0, %s309
    %s310 = sphi 0, %s307
    %s311 = sphi 0, %s310
    %s327 = sphi 0, %s311
  $region4: #{conv_gaussian_encoder.1} parent=0 // loop_header_branch
    %22 = sbr.rel (%p20) target = $region8
  $region5: #{conv_gaussian_encoder.1} parent=0 // loop_body
    %s24 = ssub.s32 %s19, 1
    %s25 = ssub.s32 %s19, 2
    %s26 = sadd.s32 %s19, 1
    %s27 = ssub.s32 %s19, %s26
    %p28 = scmp.eq.s32.totalorder %s27, 0
    %s30 = sadd.s32 %s29, 1
    %s31 = scalar_select %p28, %s29, %s30
    %p34 = pneg %p28
    %p35 = scmp.eq.s32.totalorder %s19, 1
    %p36 = por %p34, %p35
    %p37 = scmp.ne.s32.totalorder %s29, %s32
    %p38 = scmp.eq.s32.totalorder %s19, 0
    %p39 = por %p37, %p38
    %p40 = scmp.ne.s32.totalorder %s29, %s32
    %p41 = scmp.eq.s32.totalorder %s24, 1
    %p42 = por %p40, %p41
    %p43 = scmp.ne.s32.totalorder %s32, %s33
    %p44 = scmp.eq.s32.totalorder %s24, 0
    %p45 = por %p43, %p44
    %p46 = scmp.ne.s32.totalorder %s32, %s33
    %p47 = scmp.eq.s32.totalorder %s25, 1
    %p48 = por %p46, %p47
    %p50 = scmp.ne.s32.totalorder %s33, %s49
    %p51 = scmp.eq.s32.totalorder %s25, 0
    %p52 = por %p50, %p51
    %s54 = sadd.s32 %s53, 1
    %p57 = scmp.eq.s32.totalorder %s19, 1
    %p58 = scmp.ne.s32.totalorder %s53, %s55
    %p59 = scmp.eq.s32.totalorder %s19, 0
    %p60 = por %p58, %p59
    %p61 = scmp.ne.s32.totalorder %s53, %s55
    %p62 = scmp.eq.s32.totalorder %s24, 1
    %p63 = por %p61, %p62
    %p64 = scmp.ne.s32.totalorder %s55, %s56
    %p65 = scmp.eq.s32.totalorder %s24, 0
    %p66 = por %p64, %p65
    %p67 = scmp.ne.s32.totalorder %s55, %s56
    %p68 = scmp.eq.s32.totalorder %s25, 1
    %p69 = por %p67, %p68
    %p71 = scmp.ne.s32.totalorder %s56, %s70
    %p72 = scmp.eq.s32.totalorder %s25, 0
    %p73 = por %p71, %p72
    %s75 = sadd.s32 %s74, 1
    %p78 = scmp.eq.s32.totalorder %s19, 1
    %p79 = scmp.ne.s32.totalorder %s74, %s76
    %p80 = scmp.eq.s32.totalorder %s19, 0
    %p81 = por %p79, %p80
    %p82 = scmp.ne.s32.totalorder %s74, %s76
    %p83 = scmp.eq.s32.totalorder %s24, 1
    %p84 = por %p82, %p83
    %p85 = scmp.ne.s32.totalorder %s76, %s77
    %p86 = scmp.eq.s32.totalorder %s24, 0
    %p87 = por %p85, %p86
    %p88 = scmp.ne.s32.totalorder %s76, %s77
    %p89 = scmp.eq.s32.totalorder %s25, 1
    %p90 = por %p88, %p89
    %p92 = scmp.ne.s32.totalorder %s77, %s91
    %p93 = scmp.eq.s32.totalorder %s25, 0
    %p94 = por %p92, %p93
    %s96 = sadd.s32 %s95, 1
    %p99 = scmp.eq.s32.totalorder %s19, 1
    %p100 = scmp.ne.s32.totalorder %s95, %s97
    %p101 = scmp.eq.s32.totalorder %s19, 0
    %p102 = por %p100, %p101
    %p103 = scmp.ne.s32.totalorder %s95, %s97
    %p104 = scmp.eq.s32.totalorder %s24, 1
    %p105 = por %p103, %p104
    %p106 = scmp.ne.s32.totalorder %s97, %s98
    %p107 = scmp.eq.s32.totalorder %s24, 0
    %p108 = por %p106, %p107
    %p109 = scmp.ne.s32.totalorder %s97, %s98
    %p110 = scmp.eq.s32.totalorder %s25, 1
    %p111 = por %p109, %p110
    %p113 = scmp.ne.s32.totalorder %s98, %s112
    %p114 = scmp.eq.s32.totalorder %s25, 0
    %p115 = por %p113, %p114
    %s117 = sadd.s32 %s116, 1
    %p120 = scmp.eq.s32.totalorder %s19, 1
    %p121 = scmp.ne.s32.totalorder %s116, %s118
    %p122 = scmp.eq.s32.totalorder %s19, 0
    %p123 = por %p121, %p122
    %p124 = scmp.ne.s32.totalorder %s116, %s118
    %p125 = scmp.eq.s32.totalorder %s24, 1
    %p126 = por %p124, %p125
    %p127 = scmp.ne.s32.totalorder %s118, %s119
    %p128 = scmp.eq.s32.totalorder %s24, 0
    %p129 = por %p127, %p128
    %p130 = scmp.ne.s32.totalorder %s118, %s119
    %p131 = scmp.eq.s32.totalorder %s25, 1
    %p132 = por %p130, %p131
    %p134 = scmp.ne.s32.totalorder %s119, %s133
    %p135 = scmp.eq.s32.totalorder %s25, 0
    %p136 = por %p134, %p135
    %s138 = sadd.s32 %s137, 1
    %p141 = scmp.eq.s32.totalorder %s19, 1
    %p142 = scmp.ne.s32.totalorder %s137, %s139
    %p143 = scmp.eq.s32.totalorder %s19, 0
    %p144 = por %p142, %p143
    %p145 = scmp.ne.s32.totalorder %s137, %s139
    %p146 = scmp.eq.s32.totalorder %s24, 1
    %p147 = por %p145, %p146
    %p148 = scmp.ne.s32.totalorder %s139, %s140
    %p149 = scmp.eq.s32.totalorder %s24, 0
    %p150 = por %p148, %p149
    %p151 = scmp.ne.s32.totalorder %s139, %s140
    %p152 = scmp.eq.s32.totalorder %s25, 1
    %p153 = por %p151, %p152
    %p155 = scmp.ne.s32.totalorder %s140, %s154
    %p156 = scmp.eq.s32.totalorder %s25, 0
    %p157 = por %p155, %p156
    %s159 = sadd.s32 %s158, 1
    %p162 = scmp.eq.s32.totalorder %s19, 1
    %p163 = scmp.ne.s32.totalorder %s158, %s160
    %p164 = scmp.eq.s32.totalorder %s19, 0
    %p165 = por %p163, %p164
    %p166 = scmp.ne.s32.totalorder %s158, %s160
    %p167 = scmp.eq.s32.totalorder %s24, 1
    %p168 = por %p166, %p167
    %p169 = scmp.ne.s32.totalorder %s160, %s161
    %p170 = scmp.eq.s32.totalorder %s24, 0
    %p171 = por %p169, %p170
    %p172 = scmp.ne.s32.totalorder %s160, %s161
    %p173 = scmp.eq.s32.totalorder %s25, 1
    %p174 = por %p172, %p173
    %p176 = scmp.ne.s32.totalorder %s161, %s175
    %p177 = scmp.eq.s32.totalorder %s25, 0
    %p178 = por %p176, %p177
    %s180 = sadd.s32 %s179, 1
    %p183 = scmp.eq.s32.totalorder %s19, 1
    %p184 = scmp.ne.s32.totalorder %s179, %s181
    %p185 = scmp.eq.s32.totalorder %s19, 0
    %p186 = por %p184, %p185
    %p187 = scmp.ne.s32.totalorder %s179, %s181
    %p188 = scmp.eq.s32.totalorder %s24, 1
    %p189 = por %p187, %p188
    %p190 = scmp.ne.s32.totalorder %s181, %s182
    %p191 = scmp.eq.s32.totalorder %s24, 0
    %p192 = por %p190, %p191
    %p193 = scmp.ne.s32.totalorder %s181, %s182
    %p194 = scmp.eq.s32.totalorder %s25, 1
    %p195 = por %p193, %p194
    %p197 = scmp.ne.s32.totalorder %s182, %s196
    %p198 = scmp.eq.s32.totalorder %s25, 0
    %p199 = por %p197, %p198
    %s201 = sadd.s32 %s200, 1
    %p204 = scmp.eq.s32.totalorder %s19, 1
    %p205 = scmp.ne.s32.totalorder %s200, %s202
    %p206 = scmp.eq.s32.totalorder %s19, 0
    %p207 = por %p205, %p206
    %p208 = scmp.ne.s32.totalorder %s200, %s202
    %p209 = scmp.eq.s32.totalorder %s24, 1
    %p210 = por %p208, %p209
    %p211 = scmp.ne.s32.totalorder %s202, %s203
    %p212 = scmp.eq.s32.totalorder %s24, 0
    %p213 = por %p211, %p212
    %p214 = scmp.ne.s32.totalorder %s202, %s203
    %p215 = scmp.eq.s32.totalorder %s25, 1
    %p216 = por %p214, %p215
    %p218 = scmp.ne.s32.totalorder %s203, %s217
    %p219 = scmp.eq.s32.totalorder %s25, 0
    %p220 = por %p218, %p219
    %s222 = sadd.s32 %s221, 1
    %p225 = scmp.eq.s32.totalorder %s19, 1
    %p226 = scmp.ne.s32.totalorder %s221, %s223
    %p227 = scmp.eq.s32.totalorder %s19, 0
    %p228 = por %p226, %p227
    %p229 = scmp.ne.s32.totalorder %s221, %s223
    %p230 = scmp.eq.s32.totalorder %s24, 1
    %p231 = por %p229, %p230
    %p232 = scmp.ne.s32.totalorder %s223, %s224
    %p233 = scmp.eq.s32.totalorder %s24, 0
    %p234 = por %p232, %p233
    %p235 = scmp.ne.s32.totalorder %s223, %s224
    %p236 = scmp.eq.s32.totalorder %s25, 1
    %p237 = por %p235, %p236
    %p239 = scmp.ne.s32.totalorder %s224, %s238
    %p240 = scmp.eq.s32.totalorder %s25, 0
    %p241 = por %p239, %p240
    %s243 = sadd.s32 %s242, 1
    %p246 = scmp.eq.s32.totalorder %s19, 1
    %p247 = scmp.ne.s32.totalorder %s242, %s244
    %p248 = scmp.eq.s32.totalorder %s19, 0
    %p249 = por %p247, %p248
    %p250 = scmp.ne.s32.totalorder %s242, %s244
    %p251 = scmp.eq.s32.totalorder %s24, 1
    %p252 = por %p250, %p251
    %p253 = scmp.ne.s32.totalorder %s244, %s245
    %p254 = scmp.eq.s32.totalorder %s24, 0
    %p255 = por %p253, %p254
    %p256 = scmp.ne.s32.totalorder %s244, %s245
    %p257 = scmp.eq.s32.totalorder %s25, 1
    %p258 = por %p256, %p257
    %p260 = scmp.ne.s32.totalorder %s245, %s259
    %p261 = scmp.eq.s32.totalorder %s25, 0
    %p262 = por %p260, %p261
    %s264 = sadd.s32 %s263, 1
    %p267 = scmp.eq.s32.totalorder %s19, 1
    %p268 = scmp.ne.s32.totalorder %s263, %s265
    %p269 = scmp.eq.s32.totalorder %s19, 0
    %p270 = por %p268, %p269
    %p271 = scmp.ne.s32.totalorder %s263, %s265
    %p272 = scmp.eq.s32.totalorder %s24, 1
    %p273 = por %p271, %p272
    %p274 = scmp.ne.s32.totalorder %s265, %s266
    %p275 = scmp.eq.s32.totalorder %s24, 0
    %p276 = por %p274, %p275
    %p277 = scmp.ne.s32.totalorder %s265, %s266
    %p278 = scmp.eq.s32.totalorder %s25, 1
    %p279 = por %p277, %p278
    %p281 = scmp.ne.s32.totalorder %s266, %s280
    %p282 = scmp.eq.s32.totalorder %s25, 0
    %p283 = por %p281, %p282
    %s285 = sadd.s32 %s284, 1
    %p288 = scmp.eq.s32.totalorder %s19, 1
    %p289 = scmp.ne.s32.totalorder %s284, %s286
    %p290 = scmp.eq.s32.totalorder %s19, 0
    %p291 = por %p289, %p290
    %p292 = scmp.ne.s32.totalorder %s284, %s286
    %p293 = scmp.eq.s32.totalorder %s24, 1
    %p294 = por %p292, %p293
    %p295 = scmp.ne.s32.totalorder %s286, %s287
    %p296 = scmp.eq.s32.totalorder %s24, 0
    %p297 = por %p295, %p296
    %p298 = scmp.ne.s32.totalorder %s286, %s287
    %p299 = scmp.eq.s32.totalorder %s25, 1
    %p300 = por %p298, %p299
    %p302 = scmp.ne.s32.totalorder %s287, %s301
    %p303 = scmp.eq.s32.totalorder %s25, 0
    %p304 = por %p302, %p303
    %s305 = ssub.s32 %s19, %s26
    %p306 = scmp.eq.s32.totalorder %s305, 0
    %s308 = sadd.s32 %s307, 1
    %s309 = scalar_select %p306, %s307, %s308
    %p312 = pneg %p306
    %p313 = scmp.eq.s32.totalorder %s19, 1
    %p314 = por %p312, %p313
    %p315 = scmp.ne.s32.totalorder %s307, %s310
    %p316 = scmp.eq.s32.totalorder %s19, 0
    %p317 = por %p315, %p316
    %p318 = scmp.ne.s32.totalorder %s307, %s310
    %p319 = scmp.eq.s32.totalorder %s24, 1
    %p320 = por %p318, %p319
    %p321 = scmp.ne.s32.totalorder %s310, %s311
    %p322 = scmp.eq.s32.totalorder %s24, 0
    %p323 = por %p321, %p322
    %p324 = scmp.ne.s32.totalorder %s310, %s311
    %p325 = scmp.eq.s32.totalorder %s25, 1
    %p326 = por %p324, %p325
    %p328 = scmp.ne.s32.totalorder %s311, %s327
    %p329 = scmp.eq.s32.totalorder %s25, 0
    %p330 = por %p328, %p329
    %p331 = scmp.le.s32.totalorder 1, %s19
    %p332 = scmp.lt.s32.totalorder %s19, 3
    %p333 = pnand %p331, %p332
    %p334 = pneg %p333
    // Predicated region
    $region9: #{conv_gaussian_encoder.1} parent=5 // pred_check
      _
    $region10: #{conv_gaussian_encoder.1} parent=5 // pred_check_branch
      %336 = sbr.rel (%p333) target = $region12
    $region11: #{conv_gaussian_encoder.1} parent=5 // pred_region
      %s337 = ssub.s32 %s19, 1
      // Predicated region
      $region13: #{conv_gaussian_encoder.1} parent=11 // pred_check
        %p338 = pneg %p66
      $region14: #{conv_gaussian_encoder.1} parent=11 // pred_check_branch
        %340 = sbr.rel (%p338) target = $region16
      $region15: #{conv_gaussian_encoder.1} parent=11 // pred_region
        _
      $region16: #{conv_gaussian_encoder.1} parent=11 // pred_fallthru
        _
      // Predicated region
      $region17: #{conv_gaussian_encoder.1} parent=11 // pred_check
        %p341 = pneg %p87
      $region18: #{conv_gaussian_encoder.1} parent=11 // pred_check_branch
        %343 = sbr.rel (%p341) target = $region20
      $region19: #{conv_gaussian_encoder.1} parent=11 // pred_region
        _
      $region20: #{conv_gaussian_encoder.1} parent=11 // pred_fallthru
        _
      // Predicated region
      $region21: #{conv_gaussian_encoder.1} parent=11 // pred_check
        %p344 = pneg %p108
      $region22: #{conv_gaussian_encoder.1} parent=11 // pred_check_branch
        %346 = sbr.rel (%p344) target = $region24
      $region23: #{conv_gaussian_encoder.1} parent=11 // pred_region
        _
      $region24: #{conv_gaussian_encoder.1} parent=11 // pred_fallthru
        _
      // Predicated region
      $region25: #{conv_gaussian_encoder.1} parent=11 // pred_check
        %p347 = pneg %p129
      $region26: #{conv_gaussian_encoder.1} parent=11 // pred_check_branch
        %349 = sbr.rel (%p347) target = $region28
      $region27: #{conv_gaussian_encoder.1} parent=11 // pred_region
        _
      $region28: #{conv_gaussian_encoder.1} parent=11 // pred_fallthru
        _
      // Predicated region
      $region29: #{conv_gaussian_encoder.1} parent=11 // pred_check
        %p350 = pneg %p150
      $region30: #{conv_gaussian_encoder.1} parent=11 // pred_check_branch
        %352 = sbr.rel (%p350) target = $region32
      $region31: #{conv_gaussian_encoder.1} parent=11 // pred_region
        _
      $region32: #{conv_gaussian_encoder.1} parent=11 // pred_fallthru
        _
      // Predicated region
      $region33: #{conv_gaussian_encoder.1} parent=11 // pred_check
        %p353 = pneg %p171
      $region34: #{conv_gaussian_encoder.1} parent=11 // pred_check_branch
        %355 = sbr.rel (%p353) target = $region36
      $region35: #{conv_gaussian_encoder.1} parent=11 // pred_region
        _
      $region36: #{conv_gaussian_encoder.1} parent=11 // pred_fallthru
        _
      // Predicated region
      $region37: #{conv_gaussian_encoder.1} parent=11 // pred_check
        %p356 = pneg %p192
      $region38: #{conv_gaussian_encoder.1} parent=11 // pred_check_branch
        %358 = sbr.rel (%p356) target = $region40
      $region39: #{conv_gaussian_encoder.1} parent=11 // pred_region
        _
      $region40: #{conv_gaussian_encoder.1} parent=11 // pred_fallthru
        _
      // Predicated region
      $region41: #{conv_gaussian_encoder.1} parent=11 // pred_check
        %p359 = pneg %p213
      $region42: #{conv_gaussian_encoder.1} parent=11 // pred_check_branch
        %361 = sbr.rel (%p359) target = $region44
      $region43: #{conv_gaussian_encoder.1} parent=11 // pred_region
        _
      $region44: #{conv_gaussian_encoder.1} parent=11 // pred_fallthru
        _
      // Predicated region
      $region45: #{conv_gaussian_encoder.1} parent=11 // pred_check
        %p362 = pneg %p234
      $region46: #{conv_gaussian_encoder.1} parent=11 // pred_check_branch
        %364 = sbr.rel (%p362) target = $region48
      $region47: #{conv_gaussian_encoder.1} parent=11 // pred_region
        _
      $region48: #{conv_gaussian_encoder.1} parent=11 // pred_fallthru
        _
      // Predicated region
      $region49: #{conv_gaussian_encoder.1} parent=11 // pred_check
        %p365 = pneg %p255
      $region50: #{conv_gaussian_encoder.1} parent=11 // pred_check_branch
        %367 = sbr.rel (%p365) target = $region52
      $region51: #{conv_gaussian_encoder.1} parent=11 // pred_region
        _
      $region52: #{conv_gaussian_encoder.1} parent=11 // pred_fallthru
        _
      // Predicated region
      $region53: #{conv_gaussian_encoder.1} parent=11 // pred_check
        %p368 = pneg %p276
      $region54: #{conv_gaussian_encoder.1} parent=11 // pred_check_branch
        %370 = sbr.rel (%p368) target = $region56
      $region55: #{conv_gaussian_encoder.1} parent=11 // pred_region
        _
      $region56: #{conv_gaussian_encoder.1} parent=11 // pred_fallthru
        _
      // Predicated region
      $region57: #{conv_gaussian_encoder.1} parent=11 // pred_check
        %p371 = pneg %p297
      $region58: #{conv_gaussian_encoder.1} parent=11 // pred_check_branch
        %373 = sbr.rel (%p371) target = $region60
      $region59: #{conv_gaussian_encoder.1} parent=11 // pred_region
        _
      $region60: #{conv_gaussian_encoder.1} parent=11 // pred_fallthru
        _
    $region12: #{conv_gaussian_encoder.1} parent=5 // pred_fallthru
      _
    %p374 = scmp.lt.s32.totalorder %s19, 2
    // Predicated region
    $region61: #{conv_gaussian_encoder.1} parent=5 // pred_check
      %p375 = pneg %p374
    $region62: #{conv_gaussian_encoder.1} parent=5 // pred_check_branch
      %377 = sbr.rel (%p375) target = $region64
    $region63: #{conv_gaussian_encoder.1} parent=5 // pred_region
      // Predicated region
      $region65: #{conv_gaussian_encoder.1} parent=63 // pred_check
        %p378 = pneg %p39
      $region66: #{conv_gaussian_encoder.1} parent=63 // pred_check_branch
        %380 = sbr.rel (%p378) target = $region68
      $region67: #{conv_gaussian_encoder.1} parent=63 // pred_region
        %s381 = smul.u32 8, %s19
        %p382 = scmp.lt.s32.totalorder %s381, 15
        %s383 = scalar_select %p382, %s381, 15
        %s384 = smul.addr %s383, 4
        %s385 = scalar_lea.vmem %s0, %s384
        %s386 = smul.u32 8, %s19
      $region68: #{conv_gaussian_encoder.1} parent=63 // pred_fallthru
        _
    $region64: #{conv_gaussian_encoder.1} parent=5 // pred_fallthru
      _
    %p387 = scmp.le.s32.totalorder 1, %s19
    %p388 = scmp.lt.s32.totalorder %s19, 3
    %p389 = pnand %p387, %p388
    %p390 = pneg %p389
    // Predicated region
    $region69: #{conv_gaussian_encoder.1} parent=5 // pred_check
      _
    $region70: #{conv_gaussian_encoder.1} parent=5 // pred_check_branch
      %392 = sbr.rel (%p389) target = $region72
    $region71: #{conv_gaussian_encoder.1} parent=5 // pred_region
      %s393 = ssub.s32 %s19, 1
      %s394 = smul.u32 8, %s24
      %p395 = scmp.lt.s32.totalorder %s394, 15
      %s396 = scalar_select %p395, %s394, 15
      %s397 = smul.addr %s396, 4
      %s398 = scalar_lea.vmem %s0, %s397
      %p399 = pneg %p45
      %p400 = pneg %p42
      %p401 = pneg %p66
      %p402 = pneg %p63
      %p403 = pneg %p87
      %p404 = pneg %p84
      %p405 = pneg %p108
      %p406 = pneg %p105
      %p407 = pneg %p129
      %p408 = pneg %p126
      %p409 = pneg %p150
      %p410 = pneg %p147
      %p411 = pneg %p171
      %p412 = pneg %p168
      %p413 = pneg %p192
      %p414 = pneg %p189
      %p415 = pneg %p213
      %p416 = pneg %p210
      %p417 = pneg %p234
      %p418 = pneg %p231
      %p419 = pneg %p255
      %p420 = pneg %p252
      %p421 = pneg %p276
      %p422 = pneg %p273
      %p423 = pneg %p297
      %p424 = pneg %p294
      %p425 = pneg %p323
      %p426 = pneg %p320
      %p427 = scmp.lt.s32.totalorder %s24, 1
      %s428 = scalar_select %p427, %s24, 1
      %s429 = smul.addr %s428, 4
      %s430 = scalar_lea.vmem %s13, %s429
      %s431 = smul.u32 8, %s24
      %p432 = scmp.lt.s32.totalorder %s431, 15
      %s433 = scalar_select %p432, %s431, 15
      %s434 = smul.addr %s433, 4
      %s435 = scalar_lea.vmem %s0, %s434
      %s436 = smul.u32 8, %s24
      %p437 = scmp.lt.s32.totalorder %s24, 1
      %s438 = scalar_select %p437, %s24, 1
      %s439 = smul.addr %s438, 4
      %s440 = scalar_lea.vmem %s13, %s439
      %v442 = vld [vmem:[%s435] sm:$0xf]
      %v443 = vld [vmem:[%s435 + $0x4] sm:$0xf]
      %v444 = vld [vmem:[%s435 + $0x8] sm:$0xf]
      %v445 = vld [vmem:[%s435 + $0xc] sm:$0xf]
      %v446 = vld [vmem:[%s435 + $0x10] sm:$0xf]
      %v447 = vld [vmem:[%s435 + $0x14] sm:$0xf]
      %v448 = vld [vmem:[%s435 + $0x18] sm:$0xf]
      %v449 = vld [vmem:[%s435 + $0x1c] sm:$0xf]
      %v450 = vld [vmem:[%s1] sm:$0xf]
      %v451 = vld [vmem:[%s1 + $0x4] sm:$0xf]
      %v452 = vld [vmem:[%s1 + $0x8] sm:$0xf]
      %v453 = vld [vmem:[%s1 + $0xc] sm:$0xf]
      %v454 = vld [vmem:[%s1 + $0x10] sm:$0xf]
      %v455 = vld [vmem:[%s1 + $0x14] sm:$0xf]
      %v456 = vld [vmem:[%s1 + $0x18] sm:$0xf]
      %v457 = vld [vmem:[%s1 + $0x1c] sm:$0xf]
      %v458 = vld [vmem:[%s2] sm:$0x1]
      %v460 = vlaneseq
      %v461 = vshrl.u32 %v460, 7
      %v462 = vsub.s32 0, %v461
      %v463 = vrot.slane %v458, %v462
      %v473 = vunpack.c.l.b16 %v442
      %v474 = vunpack.c.l.b16 %v443
      %v475 = vunpack.c.l.b16 %v444
      %v476 = vunpack.c.l.b16 %v445
      %v477 = vunpack.c.l.b16 %v446
      %v478 = vunpack.c.l.b16 %v447
      %v479 = vunpack.c.l.b16 %v448
      %v480 = vunpack.c.l.b16 %v449
      %v481 = vpack.c.b16 %v474, %v473
      %v482 = vpack.c.b16 %v476, %v475
      %v483 = vpack.c.b16 %v478, %v477
      %v484 = vpack.c.b16 %v480, %v479
      %v493 = vunpack.c.l.b16 %v450
      %v494 = vunpack.c.l.b16 %v451
      %v495 = vunpack.c.l.b16 %v452
      %v496 = vunpack.c.l.b16 %v453
      %v497 = vunpack.c.l.b16 %v454
      %v498 = vunpack.c.l.b16 %v455
      %v499 = vunpack.c.l.b16 %v456
      %v500 = vunpack.c.l.b16 %v457
      %v501 = vpack.c.b16 %v494, %v493
      %v502 = vpack.c.b16 %v496, %v495
      %v503 = vpack.c.b16 %v498, %v497
      %v504 = vpack.c.b16 %v500, %v499
      %vm509 = vcmask 523264
      %v511 = vsel %vm509, %v481, 0
      %v514 = vsel %vm509, %v482, 0
      %v517 = vsel %vm509, %v483, 0
      %v520 = vsel %vm509, %v484, 0
      %522 = vmatprep.subr.bf16.mxu0 0
      %523 = vmatpush1.bf16.msra.mxu0 0
      %524 = vmatprep.subr.bf16.mxu0 0
      %525 = vmatpush1.bf16.msra.mxu0 0
      %526 = vmatprep.subr.bf16.mxu0 0
      %527 = vmatpush1.bf16.msra.mxu0 0
      %528 = vmatprep.subr.bf16.mxu0 0
      %529 = vmatpush1.bf16.msra.mxu0 0
      %530 = vmatprep.subr.bf16.mxu0 0
      %531 = vmatpush1.bf16.msra.mxu0 %v504
      %532 = vmatprep.subr.bf16.mxu0 0
      %533 = vmatpush1.bf16.msra.mxu0 %v503
      %534 = vmatprep.subr.bf16.mxu0 0
      %535 = vmatpush1.bf16.msra.mxu0 %v502
      %536 = vmatprep.subr.bf16.mxu0 0
      %537 = vmatpush1.bf16.msra.mxu0 %v501
      %538 = vmatprep.subr.bf16.mxu0 0
      %539 = vmatpush2.bf16.msra.mxu0 0
      %540 = vmatprep.subr.bf16.mxu0 0
      %541 = vmatpush2.bf16.msra.mxu0 0
      %542 = vmatprep.subr.bf16.mxu0 0
      %543 = vmatpush2.bf16.msra.mxu0 0
      %544 = vmatprep.subr.bf16.mxu0 0
      %545 = vmatpush2.bf16.msra.mxu0 0
      %546 = vmatprep.subr.bf16.mxu0 0
      %547 = vmatpush2.bf16.msra.mxu0 0
      %548 = vmatprep.subr.bf16.mxu0 0
      %549 = vmatpush2.bf16.msra.mxu0 0
      %550 = vmatprep.subr.bf16.mxu0 0
      %551 = vmatpush2.bf16.msra.mxu0 0
      %552 = vmatprep.subr.bf16.mxu0 0
      %553 = vmatpush2.bf16.msra.mxu0 0
      %554 = vmatprep.mubr.bf16.mxu0 0
      %555 = vmatmul.mubr.bf16.gmra.mxu0 %v511
      %v556 = vpop.f32.mrf.mxu0
      %v557 = vadd.f32 %v463, %v556
      %v558 = vpop.f32.mrf.mxu0
      %v559 = vpop.f32.mrf.mxu0
      %v560 = vadd.f32 %v463, %v559
      %v561 = vpop.f32.mrf.mxu0
      %562 = vmatprep.mubr.bf16.mxu0 0
      %563 = vmatmul.mubr.bf16.gmra.mxu0 %v514
      %v564 = vpop.f32.mrf.mxu0
      %v565 = vadd.f32 %v463, %v564
      %v566 = vpop.f32.mrf.mxu0
      %v567 = vpop.f32.mrf.mxu0
      %v568 = vadd.f32 %v463, %v567
      %v569 = vpop.f32.mrf.mxu0
      %570 = vmatprep.mubr.bf16.mxu0 0
      %571 = vmatmul.mubr.bf16.gmra.mxu0 %v517
      %v572 = vpop.f32.mrf.mxu0
      %v573 = vadd.f32 %v463, %v572
      %v574 = vpop.f32.mrf.mxu0
      %v575 = vpop.f32.mrf.mxu0
      %v576 = vadd.f32 %v463, %v575
      %v577 = vpop.f32.mrf.mxu0
      %578 = vmatprep.mubr.bf16.mxu0 0
      %579 = vmatmul.mubr.bf16.gmra.mxu0 %v520
      %v580 = vpop.f32.mrf.mxu0
      %v581 = vadd.f32 %v463, %v580
      %v582 = vpop.f32.mrf.mxu0
      %v583 = vpop.f32.mrf.mxu0
      %v584 = vadd.f32 %v463, %v583
      %v585 = vpop.f32.mrf.mxu0
      %586 = vdwg.mxu0
      %v587 = vxor.u32 %v557, 2147483648
      %v588 = vxor.u32 %v560, 2147483648
      %v589 = vxor.u32 %v565, 2147483648
      %v590 = vxor.u32 %v568, 2147483648
      %v591 = vxor.u32 %v573, 2147483648
      %v592 = vxor.u32 %v576, 2147483648
      %v593 = vxor.u32 %v581, 2147483648
      %v594 = vxor.u32 %v584, 2147483648
      %v595 = vmul.f32 %v587, 1.442695
      %v596 = vpow.pop %v595
      %v597 = vmul.f32 %v588, 1.442695
      %v598 = vpow.pop %v597
      %v599 = vmul.f32 %v589, 1.442695
      %v600 = vpow.pop %v599
      %v601 = vmul.f32 %v590, 1.442695
      %v602 = vpow.pop %v601
      %v603 = vmul.f32 %v591, 1.442695
      %v604 = vpow.pop %v603
      %v605 = vmul.f32 %v592, 1.442695
      %v606 = vpow.pop %v605
      %v607 = vmul.f32 %v593, 1.442695
      %v608 = vpow.pop %v607
      %v609 = vmul.f32 %v594, 1.442695
      %v610 = vpow.pop %v609
      %v611 = vadd.f32 %v596, 1.0
      %v612 = vadd.f32 %v598, 1.0
      %v613 = vadd.f32 %v600, 1.0
      %v614 = vadd.f32 %v602, 1.0
      %v615 = vadd.f32 %v604, 1.0
      %v616 = vadd.f32 %v606, 1.0
      %v617 = vadd.f32 %v608, 1.0
      %v618 = vadd.f32 %v610, 1.0
      %v619 = vrcp.pop %v611
      %v620 = vmul.f32 1.0, %v619
      %v621 = vrcp.pop %v612
      %v622 = vmul.f32 1.0, %v621
      %v623 = vrcp.pop %v613
      %v624 = vmul.f32 1.0, %v623
      %v625 = vrcp.pop %v614
      %v626 = vmul.f32 1.0, %v625
      %v627 = vrcp.pop %v615
      %v628 = vmul.f32 1.0, %v627
      %v629 = vrcp.pop %v616
      %v630 = vmul.f32 1.0, %v629
      %v631 = vrcp.pop %v617
      %v632 = vmul.f32 1.0, %v631
      %v633 = vrcp.pop %v618
      %v634 = vmul.f32 1.0, %v633
      %v635 = vmul.f32 %v557, %v620
      %v636 = vmul.f32 %v560, %v622
      %v637 = vmul.f32 %v565, %v624
      %v638 = vmul.f32 %v568, %v626
      %v639 = vmul.f32 %v573, %v628
      %v640 = vmul.f32 %v576, %v630
      %v641 = vmul.f32 %v581, %v632
      %v642 = vmul.f32 %v584, %v634
      %vm643 = vcmask 261120
      %v644 = vsel %vm643, %v635, 0.0
      %645 = vadd.xlane.f32.xlu0 %v644
      %v646 = vpop.xlane.xlu0 %645
      %v647 = vsel %vm643, %v636, 0.0
      %648 = vadd.xlane.f32.xlu0 %v647
      %v649 = vpop.xlane.xlu0 %648
      %v650 = vsel %vm643, %v637, 0.0
      %651 = vadd.xlane.f32.xlu0 %v650
      %v652 = vpop.xlane.xlu0 %651
      %v653 = vsel %vm643, %v638, 0.0
      %654 = vadd.xlane.f32.xlu0 %v653
      %v655 = vpop.xlane.xlu0 %654
      %v656 = vsel %vm643, %v639, 0.0
      %657 = vadd.xlane.f32.xlu0 %v656
      %v658 = vpop.xlane.xlu0 %657
      %v659 = vsel %vm643, %v640, 0.0
      %660 = vadd.xlane.f32.xlu0 %v659
      %v661 = vpop.xlane.xlu0 %660
      %v662 = vsel %vm643, %v641, 0.0
      %663 = vadd.xlane.f32.xlu0 %v662
      %v664 = vpop.xlane.xlu0 %663
      %v665 = vsel %vm643, %v642, 0.0
      %666 = vadd.xlane.f32.xlu0 %v665
      %v667 = vpop.xlane.xlu0 %666
      %v668 = vrcp.pop 32.0
      %v669 = vmul.f32 %v646, %v668
      %v670 = vmul.f32 %v649, %v668
      %v671 = vmul.f32 %v652, %v668
      %v672 = vmul.f32 %v655, %v668
      %v673 = vmul.f32 %v658, %v668
      %v674 = vmul.f32 %v661, %v668
      %v675 = vmul.f32 %v664, %v668
      %v676 = vmul.f32 %v667, %v668
      %v677 = vadd.f32 %v669, %v670
      %v678 = vadd.f32 %v677, %v671
      %v679 = vadd.f32 %v678, %v672
      %v680 = vadd.f32 %v679, %v673
      %v681 = vadd.f32 %v680, %v674
      %v682 = vadd.f32 %v681, %v675
      %v683 = vadd.f32 %v682, %v676
      %v684 = vrot.slane %v683, 4
      %v685 = vadd.f32 %v683, %v684
      %v686 = vrot.slane %v685, 2
      %v687 = vadd.f32 %v685, %v686
      %v688 = vrot.slane %v687, 1
      %v689 = vadd.f32 %v687, %v688
      %v690 = vrcp.pop 64.0
      %v691 = vmul.f32 %v689, %v690
      %v692 = vsub.f32 %v635, %v691
      %v693 = vsub.f32 %v636, %v691
      %v694 = vsub.f32 %v637, %v691
      %v695 = vsub.f32 %v638, %v691
      %v696 = vsub.f32 %v639, %v691
      %v697 = vsub.f32 %v640, %v691
      %v698 = vsub.f32 %v641, %v691
      %v699 = vsub.f32 %v642, %v691
      %v700 = vmul.f32 %v692, %v692
      %v701 = vmul.f32 %v693, %v693
      %v702 = vmul.f32 %v694, %v694
      %v703 = vmul.f32 %v695, %v695
      %v704 = vmul.f32 %v696, %v696
      %v705 = vmul.f32 %v697, %v697
      %v706 = vmul.f32 %v698, %v698
      %v707 = vmul.f32 %v699, %v699
      %v708 = vsel %vm643, %v700, 0.0
      %709 = vadd.xlane.f32.xlu0 %v708
      %v710 = vpop.xlane.xlu0 %709
      %v711 = vsel %vm643, %v701, 0.0
      %712 = vadd.xlane.f32.xlu0 %v711
      %v713 = vpop.xlane.xlu0 %712
      %v714 = vsel %vm643, %v702, 0.0
      %715 = vadd.xlane.f32.xlu0 %v714
      %v716 = vpop.xlane.xlu0 %715
      %v717 = vsel %vm643, %v703, 0.0
      %718 = vadd.xlane.f32.xlu0 %v717
      %v719 = vpop.xlane.xlu0 %718
      %v720 = vsel %vm643, %v704, 0.0
      %721 = vadd.xlane.f32.xlu0 %v720
      %v722 = vpop.xlane.xlu0 %721
      %v723 = vsel %vm643, %v705, 0.0
      %724 = vadd.xlane.f32.xlu0 %v723
      %v725 = vpop.xlane.xlu0 %724
      %v726 = vsel %vm643, %v706, 0.0
      %727 = vadd.xlane.f32.xlu0 %v726
      %v728 = vpop.xlane.xlu0 %727
      %v729 = vsel %vm643, %v707, 0.0
      %730 = vadd.xlane.f32.xlu0 %v729
      %v731 = vpop.xlane.xlu0 %730
      %v732 = vmul.f32 %v710, %v668
      %v733 = vmul.f32 %v713, %v668
      %v734 = vmul.f32 %v716, %v668
      %v735 = vmul.f32 %v719, %v668
      %v736 = vmul.f32 %v722, %v668
      %v737 = vmul.f32 %v725, %v668
      %v738 = vmul.f32 %v728, %v668
      %v739 = vmul.f32 %v731, %v668
      %v740 = vadd.f32 %v732, %v733
      %v741 = vadd.f32 %v740, %v734
      %v742 = vadd.f32 %v741, %v735
      %v743 = vadd.f32 %v742, %v736
      %v744 = vadd.f32 %v743, %v737
      %v745 = vadd.f32 %v744, %v738
      %v746 = vadd.f32 %v745, %v739
      %v747 = vrot.slane %v746, 4
      %v748 = vadd.f32 %v746, %v747
      %v749 = vrot.slane %v748, 2
      %v750 = vadd.f32 %v748, %v749
      %v751 = vrot.slane %v750, 1
      %v752 = vadd.f32 %v750, %v751
      %v753 = vmul.f32 %v752, %v690
      %v754 = vadd.f32 %v753, 1e-05
      %v755 = vrsqrt.pop %v754
      %v756 = vmul.f32 %v692, %v755
      %v757 = vmul.f32 %v693, %v755
      %v758 = vmul.f32 %v694, %v755
      %v759 = vmul.f32 %v695, %v755
      %v760 = vmul.f32 %v696, %v755
      %v761 = vmul.f32 %v697, %v755
      %v762 = vmul.f32 %v698, %v755
      %v763 = vmul.f32 %v699, %v755
      %v764 = vld [vmem:[%s3] sm:$0x1]
      %v766 = vlaneseq
      %v767 = vshrl.u32 %v766, 7
      %v768 = vsub.s32 0, %v767
      %v769 = vrot.slane %v764, %v768
      %v771 = vmul.f32 %v756, %v769
      %v772 = vmul.f32 %v757, %v769
      %v773 = vmul.f32 %v758, %v769
      %v774 = vmul.f32 %v759, %v769
      %v775 = vmul.f32 %v760, %v769
      %v776 = vmul.f32 %v761, %v769
      %v777 = vmul.f32 %v762, %v769
      %v778 = vmul.f32 %v763, %v769
      %v779 = vld [vmem:[%s4] sm:$0x1]
      %v781 = vlaneseq
      %v782 = vshrl.u32 %v781, 7
      %v783 = vsub.s32 0, %v782
      %v784 = vrot.slane %v779, %v783
      %v786 = vadd.f32 %v771, %v784
      %v787 = vadd.f32 %v772, %v784
      %v788 = vadd.f32 %v773, %v784
      %v789 = vadd.f32 %v774, %v784
      %v790 = vadd.f32 %v775, %v784
      %v791 = vadd.f32 %v776, %v784
      %v792 = vadd.f32 %v777, %v784
      %v793 = vadd.f32 %v778, %v784
      %v794 = vpack.c.bf16 %v787, %v786
      %v795 = vpack.c.bf16 %v789, %v788
      %v796 = vpack.c.bf16 %v791, %v790
      %v797 = vpack.c.bf16 %v793, %v792
      %v798 = vld [vmem:[%s5] sm:$0xf]
      %v799 = vld [vmem:[%s5 + $0x4] sm:$0xf]
      %v800 = vld [vmem:[%s5 + $0x8] sm:$0xf]
      %v801 = vld [vmem:[%s5 + $0xc] sm:$0xf]
      %v802 = vld [vmem:[%s5 + $0x10] sm:$0xf]
      %v803 = vld [vmem:[%s5 + $0x14] sm:$0xf]
      %v804 = vld [vmem:[%s5 + $0x18] sm:$0xf]
      %v805 = vld [vmem:[%s5 + $0x1c] sm:$0xf]
      %v806 = vld [vmem:[%s5 + $0x20] sm:$0xf]
      %v807 = vld [vmem:[%s5 + $0x24] sm:$0xf]
      %v808 = vld [vmem:[%s5 + $0x28] sm:$0xf]
      %v809 = vld [vmem:[%s5 + $0x2c] sm:$0xf]
      %v810 = vld [vmem:[%s5 + $0x30] sm:$0xf]
      %v811 = vld [vmem:[%s5 + $0x34] sm:$0xf]
      %v812 = vld [vmem:[%s5 + $0x38] sm:$0xf]
      %v813 = vld [vmem:[%s5 + $0x3c] sm:$0xf]
      %v814 = vld [vmem:[%s5 + $0x40] sm:$0xf]
      %v815 = vld [vmem:[%s5 + $0x44] sm:$0xf]
      %v816 = vld [vmem:[%s5 + $0x48] sm:$0xf]
      %v817 = vld [vmem:[%s5 + $0x4c] sm:$0xf]
      %v818 = vld [vmem:[%s5 + $0x50] sm:$0xf]
      %v819 = vld [vmem:[%s5 + $0x54] sm:$0xf]
      %v820 = vld [vmem:[%s5 + $0x58] sm:$0xf]
      %v821 = vld [vmem:[%s5 + $0x5c] sm:$0xf]
      %v822 = vld [vmem:[%s5 + $0x60] sm:$0xf]
      %v823 = vld [vmem:[%s5 + $0x64] sm:$0xf]
      %v824 = vld [vmem:[%s5 + $0x68] sm:$0xf]
      %v825 = vld [vmem:[%s5 + $0x6c] sm:$0xf]
      %v826 = vld [vmem:[%s5 + $0x70] sm:$0xf]
      %v827 = vld [vmem:[%s5 + $0x74] sm:$0xf]
      %v828 = vld [vmem:[%s5 + $0x78] sm:$0xf]
      %v829 = vld [vmem:[%s5 + $0x7c] sm:$0xf]
      %v862 = vunpack.c.l.b16 %v798
      %v863 = vunpack.c.l.b16 %v799
      %v864 = vunpack.c.l.b16 %v800
      %v865 = vunpack.c.l.b16 %v801
      %v866 = vunpack.c.l.b16 %v802
      %v867 = vunpack.c.l.b16 %v803
      %v868 = vunpack.c.l.b16 %v804
      %v869 = vunpack.c.l.b16 %v805
      %v870 = vunpack.c.l.b16 %v806
      %v871 = vunpack.c.l.b16 %v807
      %v872 = vunpack.c.l.b16 %v808
      %v873 = vunpack.c.l.b16 %v809
      %v874 = vunpack.c.l.b16 %v810
      %v875 = vunpack.c.l.b16 %v811
      %v876 = vunpack.c.l.b16 %v812
      %v877 = vunpack.c.l.b16 %v813
      %v878 = vunpack.c.l.b16 %v814
      %v879 = vunpack.c.l.b16 %v815
      %v880 = vunpack.c.l.b16 %v816
      %v881 = vunpack.c.l.b16 %v817
      %v882 = vunpack.c.l.b16 %v818
      %v883 = vunpack.c.l.b16 %v819
      %v884 = vunpack.c.l.b16 %v820
      %v885 = vunpack.c.l.b16 %v821
      %v886 = vunpack.c.l.b16 %v822
      %v887 = vunpack.c.l.b16 %v823
      %v888 = vunpack.c.l.b16 %v824
      %v889 = vunpack.c.l.b16 %v825
      %v890 = vunpack.c.l.b16 %v826
      %v891 = vunpack.c.l.b16 %v827
      %v892 = vunpack.c.l.b16 %v828
      %v893 = vunpack.c.l.b16 %v829
      %v894 = vpack.c.b16 %v863, %v862
      %v895 = vpack.c.b16 %v865, %v864
      %v896 = vpack.c.b16 %v867, %v866
      %v897 = vpack.c.b16 %v869, %v868
      %v898 = vpack.c.b16 %v871, %v870
      %v899 = vpack.c.b16 %v873, %v872
      %v900 = vpack.c.b16 %v875, %v874
      %v901 = vpack.c.b16 %v877, %v876
      %v902 = vpack.c.b16 %v879, %v878
      %v903 = vpack.c.b16 %v881, %v880
      %v904 = vpack.c.b16 %v883, %v882
      %v905 = vpack.c.b16 %v885, %v884
      %v906 = vpack.c.b16 %v887, %v886
      %v907 = vpack.c.b16 %v889, %v888
      %v908 = vpack.c.b16 %v891, %v890
      %v909 = vpack.c.b16 %v893, %v892
      %v911 = vsel %vm509, %v894, 0
      %v914 = vsel %vm509, %v895, 0
      %v917 = vsel %vm509, %v896, 0
      %v920 = vsel %vm509, %v897, 0
      %v923 = vsel %vm509, %v898, 0
      %v926 = vsel %vm509, %v899, 0
      %v929 = vsel %vm509, %v900, 0
      %v932 = vsel %vm509, %v901, 0
      %v935 = vsel %vm509, %v902, 0
      %v938 = vsel %vm509, %v903, 0
      %v941 = vsel %vm509, %v904, 0
      %v944 = vsel %vm509, %v905, 0
      %v947 = vsel %vm509, %v906, 0
      %v950 = vsel %vm509, %v907, 0
      %v953 = vsel %vm509, %v908, 0
      %v956 = vsel %vm509, %v909, 0
      %958 = vmatprep.subr.bf16.mxu0 0
      %959 = vmatpush1.bf16.msra.mxu0 0
      %960 = vmatprep.subr.bf16.mxu0 0
      %961 = vmatpush1.bf16.msra.mxu0 0
      %962 = vmatprep.subr.bf16.mxu0 0
      %963 = vmatpush1.bf16.msra.mxu0 0
      %964 = vmatprep.subr.bf16.mxu0 0
      %965 = vmatpush1.bf16.msra.mxu0 0
      %966 = vmatprep.subr.bf16.mxu0 0
      %967 = vmatpush1.bf16.msra.mxu0 %v797
      %968 = vmatprep.subr.bf16.mxu0 0
      %969 = vmatpush1.bf16.msra.mxu0 %v796
      %970 = vmatprep.subr.bf16.mxu0 0
      %971 = vmatpush1.bf16.msra.mxu0 %v795
      %972 = vmatprep.subr.bf16.mxu0 0
      %973 = vmatpush1.bf16.msra.mxu0 %v794
      %974 = vmatprep.subr.bf16.mxu0 0
      %975 = vmatpush2.bf16.msra.mxu0 0
      %976 = vmatprep.subr.bf16.mxu0 0
      %977 = vmatpush2.bf16.msra.mxu0 0
      %978 = vmatprep.subr.bf16.mxu0 0
      %979 = vmatpush2.bf16.msra.mxu0 0
      %980 = vmatprep.subr.bf16.mxu0 0
      %981 = vmatpush2.bf16.msra.mxu0 0
      %982 = vmatprep.subr.bf16.mxu0 0
      %983 = vmatpush2.bf16.msra.mxu0 0
      %984 = vmatprep.subr.bf16.mxu0 0
      %985 = vmatpush2.bf16.msra.mxu0 0
      %986 = vmatprep.subr.bf16.mxu0 0
      %987 = vmatpush2.bf16.msra.mxu0 0
      %988 = vmatprep.subr.bf16.mxu0 0
      %989 = vmatpush2.bf16.msra.mxu0 0
      %990 = vmatprep.mubr.bf16.mxu0 0
      %991 = vmatmul.mubr.bf16.gmra.mxu0 %v911
      %v992 = vpop.f32.mrf.mxu0
      %v993 = vadd.f32 0.0, %v992
      %v994 = vpop.f32.mrf.mxu0
      %v995 = vpop.f32.mrf.mxu0
      %v996 = vadd.f32 0.0, %v995
      %v997 = vpop.f32.mrf.mxu0
      %998 = vmatprep.mubr.bf16.mxu0 0
      %999 = vmatmul.mubr.bf16.gmra.mxu0 %v914
      %v1000 = vpop.f32.mrf.mxu0
      %v1001 = vadd.f32 0.0, %v1000
      %v1002 = vpop.f32.mrf.mxu0
      %v1003 = vpop.f32.mrf.mxu0
      %v1004 = vadd.f32 0.0, %v1003
      %v1005 = vpop.f32.mrf.mxu0
      %1006 = vmatprep.mubr.bf16.mxu0 0
      %1007 = vmatmul.mubr.bf16.gmra.mxu0 %v917
      %v1008 = vpop.f32.mrf.mxu0
      %v1009 = vadd.f32 0.0, %v1008
      %v1010 = vpop.f32.mrf.mxu0
      %v1011 = vpop.f32.mrf.mxu0
      %v1012 = vadd.f32 0.0, %v1011
      %v1013 = vpop.f32.mrf.mxu0
      %1014 = vmatprep.mubr.bf16.mxu0 0
      %1015 = vmatmul.mubr.bf16.gmra.mxu0 %v920
      %v1016 = vpop.f32.mrf.mxu0
      %v1017 = vadd.f32 0.0, %v1016
      %v1018 = vpop.f32.mrf.mxu0
      %v1019 = vpop.f32.mrf.mxu0
      %v1020 = vadd.f32 0.0, %v1019
      %v1021 = vpop.f32.mrf.mxu0
      %1022 = vmatprep.mubr.bf16.mxu0 0
      %1023 = vmatmul.mubr.bf16.gmra.mxu0 %v923
      %v1024 = vpop.f32.mrf.mxu0
      %v1025 = vadd.f32 0.0, %v1024
      %v1026 = vpop.f32.mrf.mxu0
      %v1027 = vpop.f32.mrf.mxu0
      %v1028 = vadd.f32 0.0, %v1027
      %v1029 = vpop.f32.mrf.mxu0
      %1030 = vmatprep.mubr.bf16.mxu0 0
      %1031 = vmatmul.mubr.bf16.gmra.mxu0 %v926
      %v1032 = vpop.f32.mrf.mxu0
      %v1033 = vadd.f32 0.0, %v1032
      %v1034 = vpop.f32.mrf.mxu0
      %v1035 = vpop.f32.mrf.mxu0
      %v1036 = vadd.f32 0.0, %v1035
      %v1037 = vpop.f32.mrf.mxu0
      %1038 = vmatprep.mubr.bf16.mxu0 0
      %1039 = vmatmul.mubr.bf16.gmra.mxu0 %v929
      %v1040 = vpop.f32.mrf.mxu0
      %v1041 = vadd.f32 0.0, %v1040
      %v1042 = vpop.f32.mrf.mxu0
      %v1043 = vpop.f32.mrf.mxu0
      %v1044 = vadd.f32 0.0, %v1043
      %v1045 = vpop.f32.mrf.mxu0
      %1046 = vmatprep.mubr.bf16.mxu0 0
      %1047 = vmatmul.mubr.bf16.gmra.mxu0 %v932
      %v1048 = vpop.f32.mrf.mxu0
      %v1049 = vadd.f32 0.0, %v1048
      %v1050 = vpop.f32.mrf.mxu0
      %v1051 = vpop.f32.mrf.mxu0
      %v1052 = vadd.f32 0.0, %v1051
      %v1053 = vpop.f32.mrf.mxu0
      %1054 = vmatprep.mubr.bf16.mxu0 0
      %1055 = vmatmul.mubr.bf16.gmra.mxu0 %v935
      %v1056 = vpop.f32.mrf.mxu0
      %v1057 = vadd.f32 0.0, %v1056
      %v1058 = vpop.f32.mrf.mxu0
      %v1059 = vpop.f32.mrf.mxu0
      %v1060 = vadd.f32 0.0, %v1059
      %v1061 = vpop.f32.mrf.mxu0
      %1062 = vmatprep.mubr.bf16.mxu0 0
      %1063 = vmatmul.mubr.bf16.gmra.mxu0 %v938
      %v1064 = vpop.f32.mrf.mxu0
      %v1065 = vadd.f32 0.0, %v1064
      %v1066 = vpop.f32.mrf.mxu0
      %v1067 = vpop.f32.mrf.mxu0
      %v1068 = vadd.f32 0.0, %v1067
      %v1069 = vpop.f32.mrf.mxu0
      %1070 = vmatprep.mubr.bf16.mxu0 0
      %1071 = vmatmul.mubr.bf16.gmra.mxu0 %v941
      %v1072 = vpop.f32.mrf.mxu0
      %v1073 = vadd.f32 0.0, %v1072
      %v1074 = vpop.f32.mrf.mxu0
      %v1075 = vpop.f32.mrf.mxu0
      %v1076 = vadd.f32 0.0, %v1075
      %v1077 = vpop.f32.mrf.mxu0
      %1078 = vmatprep.mubr.bf16.mxu0 0
      %1079 = vmatmul.mubr.bf16.gmra.mxu0 %v944
      %v1080 = vpop.f32.mrf.mxu0
      %v1081 = vadd.f32 0.0, %v1080
      %v1082 = vpop.f32.mrf.mxu0
      %v1083 = vpop.f32.mrf.mxu0
      %v1084 = vadd.f32 0.0, %v1083
      %v1085 = vpop.f32.mrf.mxu0
      %1086 = vmatprep.mubr.bf16.mxu0 0
      %1087 = vmatmul.mubr.bf16.gmra.mxu0 %v947
      %v1088 = vpop.f32.mrf.mxu0
      %v1089 = vadd.f32 0.0, %v1088
      %v1090 = vpop.f32.mrf.mxu0
      %v1091 = vpop.f32.mrf.mxu0
      %v1092 = vadd.f32 0.0, %v1091
      %v1093 = vpop.f32.mrf.mxu0
      %1094 = vmatprep.mubr.bf16.mxu0 0
      %1095 = vmatmul.mubr.bf16.gmra.mxu0 %v950
      %v1096 = vpop.f32.mrf.mxu0
      %v1097 = vadd.f32 0.0, %v1096
      %v1098 = vpop.f32.mrf.mxu0
      %v1099 = vpop.f32.mrf.mxu0
      %v1100 = vadd.f32 0.0, %v1099
      %v1101 = vpop.f32.mrf.mxu0
      %1102 = vmatprep.mubr.bf16.mxu0 0
      %1103 = vmatmul.mubr.bf16.gmra.mxu0 %v953
      %v1104 = vpop.f32.mrf.mxu0
      %v1105 = vadd.f32 0.0, %v1104
      %v1106 = vpop.f32.mrf.mxu0
      %v1107 = vpop.f32.mrf.mxu0
      %v1108 = vadd.f32 0.0, %v1107
      %v1109 = vpop.f32.mrf.mxu0
      %1110 = vmatprep.mubr.bf16.mxu0 0
      %1111 = vmatmul.mubr.bf16.gmra.mxu0 %v956
      %v1112 = vpop.f32.mrf.mxu0
      %v1113 = vadd.f32 0.0, %v1112
      %v1114 = vpop.f32.mrf.mxu0
      %v1115 = vpop.f32.mrf.mxu0
      %v1116 = vadd.f32 0.0, %v1115
      %v1117 = vpop.f32.mrf.mxu0
      %1118 = vdwg.mxu0
      %v1119 = vpack.c.bf16 %v996, %v993
      %v1120 = vpack.c.bf16 %v1004, %v1001
      %v1121 = vpack.c.bf16 %v1012, %v1009
      %v1122 = vpack.c.bf16 %v1020, %v1017
      %v1123 = vpack.c.bf16 %v1028, %v1025
      %v1124 = vpack.c.bf16 %v1036, %v1033
      %v1125 = vpack.c.bf16 %v1044, %v1041
      %v1126 = vpack.c.bf16 %v1052, %v1049
      %v1127 = vpack.c.bf16 %v1060, %v1057
      %v1128 = vpack.c.bf16 %v1068, %v1065
      %v1129 = vpack.c.bf16 %v1076, %v1073
      %v1130 = vpack.c.bf16 %v1084, %v1081
      %v1131 = vpack.c.bf16 %v1092, %v1089
      %v1132 = vpack.c.bf16 %v1100, %v1097
      %v1133 = vpack.c.bf16 %v1108, %v1105
      %v1134 = vpack.c.bf16 %v1116, %v1113
      %1136 = vrot.lane.b32.xlu0 %v1120, 32
      %v1137 = vpop.permute.xlu0 %1136
      %1139 = vrot.lane.b32.xlu0 %v1121, 64
      %v1140 = vpop.permute.xlu0 %1139
      %1142 = vrot.lane.b32.xlu0 %v1122, 96
      %v1143 = vpop.permute.xlu0 %1142
      %1145 = vrot.lane.b32.xlu0 %v1124, 32
      %v1146 = vpop.permute.xlu0 %1145
      %1148 = vrot.lane.b32.xlu0 %v1125, 64
      %v1149 = vpop.permute.xlu0 %1148
      %1151 = vrot.lane.b32.xlu0 %v1126, 96
      %v1152 = vpop.permute.xlu0 %1151
      %1154 = vrot.lane.b32.xlu0 %v1128, 32
      %v1155 = vpop.permute.xlu0 %1154
      %1157 = vrot.lane.b32.xlu0 %v1129, 64
      %v1158 = vpop.permute.xlu0 %1157
      %1160 = vrot.lane.b32.xlu0 %v1130, 96
      %v1161 = vpop.permute.xlu0 %1160
      %1163 = vrot.lane.b32.xlu0 %v1132, 32
      %v1164 = vpop.permute.xlu0 %1163
      %1166 = vrot.lane.b32.xlu0 %v1133, 64
      %v1167 = vpop.permute.xlu0 %1166
      %1169 = vrot.lane.b32.xlu0 %v1134, 96
      %v1170 = vpop.permute.xlu0 %1169
      %v1173 = vsel %vm643, %v1119, %v1137
      %v1175 = vsel %vm509, %v1173, %v1140
      %vm1176 = vcmask 785408
      %v1178 = vsel %vm1176, %v1175, %v1143
      %v1182 = vsel %vm643, %v1123, %v1146
      %v1184 = vsel %vm509, %v1182, %v1149
      %v1186 = vsel %vm1176, %v1184, %v1152
      %v1190 = vsel %vm643, %v1127, %v1155
      %v1192 = vsel %vm509, %v1190, %v1158
      %v1194 = vsel %vm1176, %v1192, %v1161
      %v1198 = vsel %vm643, %v1131, %v1164
      %v1200 = vsel %vm509, %v1198, %v1167
      %v1202 = vsel %vm1176, %v1200, %v1170
      %v1204 = vld [vmem:[%s6] sm:$0xf]
      %v1205 = vld [vmem:[%s6 + $0x4] sm:$0xf]
      %v1206 = vld [vmem:[%s6 + $0x8] sm:$0xf]
      %v1207 = vld [vmem:[%s6 + $0xc] sm:$0xf]
      %v1208 = vld [vmem:[%s6 + $0x10] sm:$0xf]
      %v1209 = vld [vmem:[%s6 + $0x14] sm:$0xf]
      %v1210 = vld [vmem:[%s6 + $0x18] sm:$0xf]
      %v1211 = vld [vmem:[%s6 + $0x1c] sm:$0xf]
      %v1212 = vld [vmem:[%s6 + $0x20] sm:$0xf]
      %v1213 = vld [vmem:[%s6 + $0x24] sm:$0xf]
      %v1214 = vld [vmem:[%s6 + $0x28] sm:$0xf]
      %v1215 = vld [vmem:[%s6 + $0x2c] sm:$0xf]
      %v1216 = vld [vmem:[%s6 + $0x30] sm:$0xf]
      %v1217 = vld [vmem:[%s6 + $0x34] sm:$0xf]
      %v1218 = vld [vmem:[%s6 + $0x38] sm:$0xf]
      %v1219 = vld [vmem:[%s6 + $0x3c] sm:$0xf]
      %v1220 = vld [vmem:[%s6 + $0x40] sm:$0xf]
      %v1221 = vld [vmem:[%s6 + $0x44] sm:$0xf]
      %v1222 = vld [vmem:[%s6 + $0x48] sm:$0xf]
      %v1223 = vld [vmem:[%s6 + $0x4c] sm:$0xf]
      %v1224 = vld [vmem:[%s6 + $0x50] sm:$0xf]
      %v1225 = vld [vmem:[%s6 + $0x54] sm:$0xf]
      %v1226 = vld [vmem:[%s6 + $0x58] sm:$0xf]
      %v1227 = vld [vmem:[%s6 + $0x5c] sm:$0xf]
      %v1228 = vld [vmem:[%s6 + $0x60] sm:$0xf]
      %v1229 = vld [vmem:[%s6 + $0x64] sm:$0xf]
      %v1230 = vld [vmem:[%s6 + $0x68] sm:$0xf]
      %v1231 = vld [vmem:[%s6 + $0x6c] sm:$0xf]
      %v1232 = vld [vmem:[%s6 + $0x70] sm:$0xf]
      %v1233 = vld [vmem:[%s6 + $0x74] sm:$0xf]
      %v1234 = vld [vmem:[%s6 + $0x78] sm:$0xf]
      %v1235 = vld [vmem:[%s6 + $0x7c] sm:$0xf]
      %v1236 = vld [vmem:[%s6 + $0x80] sm:$0xf]
      %v1237 = vld [vmem:[%s6 + $0x84] sm:$0xf]
      %v1238 = vld [vmem:[%s6 + $0x88] sm:$0xf]
      %v1239 = vld [vmem:[%s6 + $0x8c] sm:$0xf]
      %v1240 = vld [vmem:[%s6 + $0x90] sm:$0xf]
      %v1241 = vld [vmem:[%s6 + $0x94] sm:$0xf]
      %v1242 = vld [vmem:[%s6 + $0x98] sm:$0xf]
      %v1243 = vld [vmem:[%s6 + $0x9c] sm:$0xf]
      %v1244 = vld [vmem:[%s6 + $0xa0] sm:$0xf]
      %v1245 = vld [vmem:[%s6 + $0xa4] sm:$0xf]
      %v1246 = vld [vmem:[%s6 + $0xa8] sm:$0xf]
      %v1247 = vld [vmem:[%s6 + $0xac] sm:$0xf]
      %v1248 = vld [vmem:[%s6 + $0xb0] sm:$0xf]
      %v1249 = vld [vmem:[%s6 + $0xb4] sm:$0xf]
      %v1250 = vld [vmem:[%s6 + $0xb8] sm:$0xf]
      %v1251 = vld [vmem:[%s6 + $0xbc] sm:$0xf]
      %v1252 = vld [vmem:[%s6 + $0xc0] sm:$0xf]
      %v1253 = vld [vmem:[%s6 + $0xc4] sm:$0xf]
      %v1254 = vld [vmem:[%s6 + $0xc8] sm:$0xf]
      %v1255 = vld [vmem:[%s6 + $0xcc] sm:$0xf]
      %v1256 = vld [vmem:[%s6 + $0xd0] sm:$0xf]
      %v1257 = vld [vmem:[%s6 + $0xd4] sm:$0xf]
      %v1258 = vld [vmem:[%s6 + $0xd8] sm:$0xf]
      %v1259 = vld [vmem:[%s6 + $0xdc] sm:$0xf]
      %v1260 = vld [vmem:[%s6 + $0xe0] sm:$0xf]
      %v1261 = vld [vmem:[%s6 + $0xe4] sm:$0xf]
      %v1262 = vld [vmem:[%s6 + $0xe8] sm:$0xf]
      %v1263 = vld [vmem:[%s6 + $0xec] sm:$0xf]
      %v1264 = vld [vmem:[%s6 + $0xf0] sm:$0xf]
      %v1265 = vld [vmem:[%s6 + $0xf4] sm:$0xf]
      %v1266 = vld [vmem:[%s6 + $0xf8] sm:$0xf]
      %v1267 = vld [vmem:[%s6 + $0xfc] sm:$0xf]
      %v1268 = vld [vmem:[%s7] sm:$0x1]
      %v1270 = vlaneseq
      %v1271 = vshrl.u32 %v1270, 7
      %v1272 = vsub.s32 0, %v1271
      %v1273 = vrot.slane %v1268, %v1272
      %v1339 = vunpack.c.l.b16 %v1204
      %v1340 = vunpack.c.l.b16 %v1205
      %v1341 = vunpack.c.l.b16 %v1206
      %v1342 = vunpack.c.l.b16 %v1207
      %v1343 = vunpack.c.l.b16 %v1208
      %v1344 = vunpack.c.l.b16 %v1209
      %v1345 = vunpack.c.l.b16 %v1210
      %v1346 = vunpack.c.l.b16 %v1211
      %v1347 = vunpack.c.l.b16 %v1212
      %v1348 = vunpack.c.l.b16 %v1213
      %v1349 = vunpack.c.l.b16 %v1214
      %v1350 = vunpack.c.l.b16 %v1215
      %v1351 = vunpack.c.l.b16 %v1216
      %v1352 = vunpack.c.l.b16 %v1217
      %v1353 = vunpack.c.l.b16 %v1218
      %v1354 = vunpack.c.l.b16 %v1219
      %v1355 = vunpack.c.l.b16 %v1220
      %v1356 = vunpack.c.l.b16 %v1221
      %v1357 = vunpack.c.l.b16 %v1222
      %v1358 = vunpack.c.l.b16 %v1223
      %v1359 = vunpack.c.l.b16 %v1224
      %v1360 = vunpack.c.l.b16 %v1225
      %v1361 = vunpack.c.l.b16 %v1226
      %v1362 = vunpack.c.l.b16 %v1227
      %v1363 = vunpack.c.l.b16 %v1228
      %v1364 = vunpack.c.l.b16 %v1229
      %v1365 = vunpack.c.l.b16 %v1230
      %v1366 = vunpack.c.l.b16 %v1231
      %v1367 = vunpack.c.l.b16 %v1232
      %v1368 = vunpack.c.l.b16 %v1233
      %v1369 = vunpack.c.l.b16 %v1234
      %v1370 = vunpack.c.l.b16 %v1235
      %v1371 = vunpack.c.l.b16 %v1236
      %v1372 = vunpack.c.l.b16 %v1237
      %v1373 = vunpack.c.l.b16 %v1238
      %v1374 = vunpack.c.l.b16 %v1239
      %v1375 = vunpack.c.l.b16 %v1240
      %v1376 = vunpack.c.l.b16 %v1241
      %v1377 = vunpack.c.l.b16 %v1242
      %v1378 = vunpack.c.l.b16 %v1243
      %v1379 = vunpack.c.l.b16 %v1244
      %v1380 = vunpack.c.l.b16 %v1245
      %v1381 = vunpack.c.l.b16 %v1246
      %v1382 = vunpack.c.l.b16 %v1247
      %v1383 = vunpack.c.l.b16 %v1248
      %v1384 = vunpack.c.l.b16 %v1249
      %v1385 = vunpack.c.l.b16 %v1250
      %v1386 = vunpack.c.l.b16 %v1251
      %v1387 = vunpack.c.l.b16 %v1252
      %v1388 = vunpack.c.l.b16 %v1253
      %v1389 = vunpack.c.l.b16 %v1254
      %v1390 = vunpack.c.l.b16 %v1255
      %v1391 = vunpack.c.l.b16 %v1256
      %v1392 = vunpack.c.l.b16 %v1257
      %v1393 = vunpack.c.l.b16 %v1258
      %v1394 = vunpack.c.l.b16 %v1259
      %v1395 = vunpack.c.l.b16 %v1260
      %v1396 = vunpack.c.l.b16 %v1261
      %v1397 = vunpack.c.l.b16 %v1262
      %v1398 = vunpack.c.l.b16 %v1263
      %v1399 = vunpack.c.l.b16 %v1264
      %v1400 = vunpack.c.l.b16 %v1265
      %v1401 = vunpack.c.l.b16 %v1266
      %v1402 = vunpack.c.l.b16 %v1267
      %v1403 = vpack.c.b16 %v1340, %v1339
      %v1404 = vpack.c.b16 %v1342, %v1341
      %v1405 = vpack.c.b16 %v1344, %v1343
      %v1406 = vpack.c.b16 %v1346, %v1345
      %v1407 = vpack.c.b16 %v1348, %v1347
      %v1408 = vpack.c.b16 %v1350, %v1349
      %v1409 = vpack.c.b16 %v1352, %v1351
      %v1410 = vpack.c.b16 %v1354, %v1353
      %v1411 = vpack.c.b16 %v1356, %v1355
      %v1412 = vpack.c.b16 %v1358, %v1357
      %v1413 = vpack.c.b16 %v1360, %v1359
      %v1414 = vpack.c.b16 %v1362, %v1361
      %v1415 = vpack.c.b16 %v1364, %v1363
      %v1416 = vpack.c.b16 %v1366, %v1365
      %v1417 = vpack.c.b16 %v1368, %v1367
      %v1418 = vpack.c.b16 %v1370, %v1369
      %v1419 = vpack.c.b16 %v1372, %v1371
      %v1420 = vpack.c.b16 %v1374, %v1373
      %v1421 = vpack.c.b16 %v1376, %v1375
      %v1422 = vpack.c.b16 %v1378, %v1377
      %v1423 = vpack.c.b16 %v1380, %v1379
      %v1424 = vpack.c.b16 %v1382, %v1381
      %v1425 = vpack.c.b16 %v1384, %v1383
      %v1426 = vpack.c.b16 %v1386, %v1385
      %v1427 = vpack.c.b16 %v1388, %v1387
      %v1428 = vpack.c.b16 %v1390, %v1389
      %v1429 = vpack.c.b16 %v1392, %v1391
      %v1430 = vpack.c.b16 %v1394, %v1393
      %v1431 = vpack.c.b16 %v1396, %v1395
      %v1432 = vpack.c.b16 %v1398, %v1397
      %v1433 = vpack.c.b16 %v1400, %v1399
      %v1434 = vpack.c.b16 %v1402, %v1401
      %1467 = vmatprep.subr.bf16.mxu0 0
      %1468 = vmatpush1.bf16.msra.mxu0 %v1410
      %1469 = vmatprep.subr.bf16.mxu0 0
      %1470 = vmatpush1.bf16.msra.mxu0 %v1409
      %1471 = vmatprep.subr.bf16.mxu0 0
      %1472 = vmatpush1.bf16.msra.mxu0 %v1408
      %1473 = vmatprep.subr.bf16.mxu0 0
      %1474 = vmatpush1.bf16.msra.mxu0 %v1407
      %1475 = vmatprep.subr.bf16.mxu0 0
      %1476 = vmatpush1.bf16.msra.mxu0 %v1406
      %1477 = vmatprep.subr.bf16.mxu0 0
      %1478 = vmatpush1.bf16.msra.mxu0 %v1405
      %1479 = vmatprep.subr.bf16.mxu0 0
      %1480 = vmatpush1.bf16.msra.mxu0 %v1404
      %1481 = vmatprep.subr.bf16.mxu0 0
      %1482 = vmatpush1.bf16.msra.mxu0 %v1403
      %1483 = vmatprep.subr.bf16.mxu0 0
      %1484 = vmatpush2.bf16.msra.mxu0 %v1418
      %1485 = vmatprep.subr.bf16.mxu0 0
      %1486 = vmatpush2.bf16.msra.mxu0 %v1417
      %1487 = vmatprep.subr.bf16.mxu0 0
      %1488 = vmatpush2.bf16.msra.mxu0 %v1416
      %1489 = vmatprep.subr.bf16.mxu0 0
      %1490 = vmatpush2.bf16.msra.mxu0 %v1415
      %1491 = vmatprep.subr.bf16.mxu0 0
      %1492 = vmatpush2.bf16.msra.mxu0 %v1414
      %1493 = vmatprep.subr.bf16.mxu0 0
      %1494 = vmatpush2.bf16.msra.mxu0 %v1413
      %1495 = vmatprep.subr.bf16.mxu0 0
      %1496 = vmatpush2.bf16.msra.mxu0 %v1412
      %1497 = vmatprep.subr.bf16.mxu0 0
      %1498 = vmatpush2.bf16.msra.mxu0 %v1411
      %1499 = vmatprep.mubr.bf16.mxu0 %v1186
      %1500 = vmatmul.mubr.bf16.gmra.mxu0 %v1178
      %v1501 = vpop.f32.mrf.mxu0
      %v1502 = vadd.f32 %v1273, %v1501
      %v1503 = vpop.f32.mrf.mxu0
      %v1504 = vpop.f32.mrf.mxu0
      %v1505 = vadd.f32 %v1273, %v1504
      %v1506 = vpop.f32.mrf.mxu0
      %1507 = vdwg.mxu0
      %1508 = vmatprep.subr.bf16.mxu0 0
      %1509 = vmatpush1.bf16.msra.mxu0 %v1426
      %1510 = vmatprep.subr.bf16.mxu0 0
      %1511 = vmatpush1.bf16.msra.mxu0 %v1425
      %1512 = vmatprep.subr.bf16.mxu0 0
      %1513 = vmatpush1.bf16.msra.mxu0 %v1424
      %1514 = vmatprep.subr.bf16.mxu0 0
      %1515 = vmatpush1.bf16.msra.mxu0 %v1423
      %1516 = vmatprep.subr.bf16.mxu0 0
      %1517 = vmatpush1.bf16.msra.mxu0 %v1422
      %1518 = vmatprep.subr.bf16.mxu0 0
      %1519 = vmatpush1.bf16.msra.mxu0 %v1421
      %1520 = vmatprep.subr.bf16.mxu0 0
      %1521 = vmatpush1.bf16.msra.mxu0 %v1420
      %1522 = vmatprep.subr.bf16.mxu0 0
      %1523 = vmatpush1.bf16.msra.mxu0 %v1419
      %1524 = vmatprep.subr.bf16.mxu0 0
      %1525 = vmatpush2.bf16.msra.mxu0 %v1434
      %1526 = vmatprep.subr.bf16.mxu0 0
      %1527 = vmatpush2.bf16.msra.mxu0 %v1433
      %1528 = vmatprep.subr.bf16.mxu0 0
      %1529 = vmatpush2.bf16.msra.mxu0 %v1432
      %1530 = vmatprep.subr.bf16.mxu0 0
      %1531 = vmatpush2.bf16.msra.mxu0 %v1431
      %1532 = vmatprep.subr.bf16.mxu0 0
      %1533 = vmatpush2.bf16.msra.mxu0 %v1430
      %1534 = vmatprep.subr.bf16.mxu0 0
      %1535 = vmatpush2.bf16.msra.mxu0 %v1429
      %1536 = vmatprep.subr.bf16.mxu0 0
      %1537 = vmatpush2.bf16.msra.mxu0 %v1428
      %1538 = vmatprep.subr.bf16.mxu0 0
      %1539 = vmatpush2.bf16.msra.mxu0 %v1427
      %1540 = vmatprep.mubr.bf16.mxu0 %v1202
      %1541 = vmatmul.mubr.bf16.gmra.mxu0 %v1194
      %v1542 = vpop.f32.mrf.mxu0
      %v1543 = vadd.f32 %v1502, %v1542
      %v1544 = vpop.f32.mrf.mxu0
      %v1545 = vpop.f32.mrf.mxu0
      %v1546 = vadd.f32 %v1505, %v1545
      %v1547 = vpop.f32.mrf.mxu0
      %1548 = vdwg.mxu0
      %v1549 = vxor.u32 %v1543, 2147483648
      %v1550 = vxor.u32 %v1546, 2147483648
      %v1551 = vmul.f32 %v1549, 1.442695
      %v1552 = vpow.pop %v1551
      %v1553 = vmul.f32 %v1550, 1.442695
      %v1554 = vpow.pop %v1553
      %v1555 = vadd.f32 %v1552, 1.0
      %v1556 = vadd.f32 %v1554, 1.0
      %v1557 = vrcp.pop %v1555
      %v1558 = vmul.f32 1.0, %v1557
      %v1559 = vrcp.pop %v1556
      %v1560 = vmul.f32 1.0, %v1559
      %v1561 = vmul.f32 %v1543, %v1558
      %v1562 = vmul.f32 %v1546, %v1560
      %v1563 = vsel %vm509, %v1561, 0.0
      %1564 = vadd.xlane.f32.xlu0 %v1563
      %v1565 = vpop.xlane.xlu0 %1564
      %v1566 = vsel %vm509, %v1562, 0.0
      %1567 = vadd.xlane.f32.xlu0 %v1566
      %v1568 = vpop.xlane.xlu0 %1567
      %v1569 = vmul.f32 %v1565, %v690
      %v1570 = vmul.f32 %v1568, %v690
      %v1571 = vadd.f32 %v1569, %v1570
      %v1572 = vrot.slane %v1571, 4
      %v1573 = vadd.f32 %v1571, %v1572
      %v1574 = vrot.slane %v1573, 2
      %v1575 = vadd.f32 %v1573, %v1574
      %v1576 = vrot.slane %v1575, 1
      %v1577 = vadd.f32 %v1575, %v1576
      %v1578 = vrcp.pop 16.0
      %v1579 = vmul.f32 %v1577, %v1578
      %v1580 = vsub.f32 %v1561, %v1579
      %v1581 = vsub.f32 %v1562, %v1579
      %v1582 = vmul.f32 %v1580, %v1580
      %v1583 = vmul.f32 %v1581, %v1581
      %v1584 = vsel %vm509, %v1582, 0.0
      %1585 = vadd.xlane.f32.xlu0 %v1584
      %v1586 = vpop.xlane.xlu0 %1585
      %v1587 = vsel %vm509, %v1583, 0.0
      %1588 = vadd.xlane.f32.xlu0 %v1587
      %v1589 = vpop.xlane.xlu0 %1588
      %v1590 = vmul.f32 %v1586, %v690
      %v1591 = vmul.f32 %v1589, %v690
      %v1592 = vadd.f32 %v1590, %v1591
      %v1593 = vrot.slane %v1592, 4
      %v1594 = vadd.f32 %v1592, %v1593
      %v1595 = vrot.slane %v1594, 2
      %v1596 = vadd.f32 %v1594, %v1595
      %v1597 = vrot.slane %v1596, 1
      %v1598 = vadd.f32 %v1596, %v1597
      %v1599 = vmul.f32 %v1598, %v1578
      %v1600 = vadd.f32 %v1599, 1e-05
      %v1601 = vrsqrt.pop %v1600
      %v1602 = vmul.f32 %v1580, %v1601
      %v1603 = vmul.f32 %v1581, %v1601
      %v1604 = vld [vmem:[%s8] sm:$0x1]
      %v1606 = vlaneseq
      %v1607 = vshrl.u32 %v1606, 7
      %v1608 = vsub.s32 0, %v1607
      %v1609 = vrot.slane %v1604, %v1608
      %v1611 = vmul.f32 %v1602, %v1609
      %v1612 = vmul.f32 %v1603, %v1609
      %v1613 = vld [vmem:[%s9] sm:$0x1]
      %v1615 = vlaneseq
      %v1616 = vshrl.u32 %v1615, 7
      %v1617 = vsub.s32 0, %v1616
      %v1618 = vrot.slane %v1613, %v1617
      %v1620 = vadd.f32 %v1611, %v1618
      %v1621 = vadd.f32 %v1612, %v1618
      %v1622 = vpack.c.bf16 %v1621, %v1620
      %v1623 = vld [vmem:[%s10] sm:$0x3]
      %vm1624 = vcmask 130048
      %v1626 = vsel %vm1624, %v1623, 0
      %1628 = vmatprep.subr.bf16.mxu0 0
      %1629 = vmatpush1.bf16.msra.mxu0 0
      %1630 = vmatprep.subr.bf16.mxu0 0
      %1631 = vmatpush1.bf16.msra.mxu0 0
      %1632 = vmatprep.subr.bf16.mxu0 0
      %1633 = vmatpush1.bf16.msra.mxu0 0
      %1634 = vmatprep.subr.bf16.mxu0 0
      %1635 = vmatpush1.bf16.msra.mxu0 0
      %1636 = vmatprep.subr.bf16.mxu0 0
      %1637 = vmatpush1.bf16.msra.mxu0 0
      %1638 = vmatprep.subr.bf16.mxu0 0
      %1639 = vmatpush1.bf16.msra.mxu0 0
      %1640 = vmatprep.subr.bf16.mxu0 0
      %1641 = vmatpush1.bf16.msra.mxu0 0
      %1642 = vmatprep.subr.bf16.mxu0 0
      %1643 = vmatpush1.bf16.msra.mxu0 %v1622
      %1644 = vmatprep.subr.bf16.mxu0 0
      %1645 = vmatpush2.bf16.msra.mxu0 0
      %1646 = vmatprep.subr.bf16.mxu0 0
      %1647 = vmatpush2.bf16.msra.mxu0 0
      %1648 = vmatprep.subr.bf16.mxu0 0
      %1649 = vmatpush2.bf16.msra.mxu0 0
      %1650 = vmatprep.subr.bf16.mxu0 0
      %1651 = vmatpush2.bf16.msra.mxu0 0
      %1652 = vmatprep.subr.bf16.mxu0 0
      %1653 = vmatpush2.bf16.msra.mxu0 0
      %1654 = vmatprep.subr.bf16.mxu0 0
      %1655 = vmatpush2.bf16.msra.mxu0 0
      %1656 = vmatprep.subr.bf16.mxu0 0
      %1657 = vmatpush2.bf16.msra.mxu0 0
      %1658 = vmatprep.subr.bf16.mxu0 0
      %1659 = vmatpush2.bf16.msra.mxu0 0
      %1660 = vmatprep.mubr.bf16.mxu0 0
      %1661 = vmatmul.mubr.bf16.gmra.mxu0 %v1626
      %v1662 = vpop.f32.mrf.mxu0
      %v1663 = vadd.f32 0.0, %v1662
      %v1664 = vpop.f32.mrf.mxu0
      %v1665 = vpop.f32.mrf.mxu0
      %v1666 = vpop.f32.mrf.mxu0
      %1667 = vdwg.mxu0
      %v1668 = vld [vmem:[%s11] sm:$0xf]
      %v1669 = vld [vmem:[%s11 + $0x4] sm:$0xf]
      %v1670 = vld [vmem:[%s11 + $0x8] sm:$0xf]
      %v1671 = vld [vmem:[%s11 + $0xc] sm:$0xf]
      %v1672 = vld [vmem:[%s11 + $0x10] sm:$0xf]
      %v1673 = vld [vmem:[%s11 + $0x14] sm:$0xf]
      %v1674 = vld [vmem:[%s11 + $0x18] sm:$0xf]
      %v1675 = vld [vmem:[%s11 + $0x1c] sm:$0xf]
      %v1676 = vpack.c.bf16 %v1663, %v1663
      %v1677 = vld [vmem:[%s12] sm:$0x1]
      %v1679 = vlaneseq
      %v1680 = vshrl.u32 %v1679, 7
      %v1681 = vsub.s32 0, %v1680
      %v1682 = vrot.slane %v1677, %v1681
      %v1692 = vunpack.c.l.b16 %v1668
      %v1693 = vunpack.c.l.b16 %v1669
      %v1694 = vunpack.c.l.b16 %v1670
      %v1695 = vunpack.c.l.b16 %v1671
      %v1696 = vunpack.c.l.b16 %v1672
      %v1697 = vunpack.c.l.b16 %v1673
      %v1698 = vunpack.c.l.b16 %v1674
      %v1699 = vunpack.c.l.b16 %v1675
      %v1700 = vpack.c.b16 %v1693, %v1692
      %v1701 = vpack.c.b16 %v1695, %v1694
      %v1702 = vpack.c.b16 %v1697, %v1696
      %v1703 = vpack.c.b16 %v1699, %v1698
      %v1709 = vsel %vm509, %v1676, 0
      %1711 = vmatprep.subr.bf16.mxu0 0
      %1712 = vmatpush1.bf16.msra.mxu0 0
      %1713 = vmatprep.subr.bf16.mxu0 0
      %1714 = vmatpush1.bf16.msra.mxu0 0
      %1715 = vmatprep.subr.bf16.mxu0 0
      %1716 = vmatpush1.bf16.msra.mxu0 0
      %1717 = vmatprep.subr.bf16.mxu0 0
      %1718 = vmatpush1.bf16.msra.mxu0 0
      %1719 = vmatprep.subr.bf16.mxu0 0
      %1720 = vmatpush1.bf16.msra.mxu0 %v1703
      %1721 = vmatprep.subr.bf16.mxu0 0
      %1722 = vmatpush1.bf16.msra.mxu0 %v1702
      %1723 = vmatprep.subr.bf16.mxu0 0
      %1724 = vmatpush1.bf16.msra.mxu0 %v1701
      %1725 = vmatprep.subr.bf16.mxu0 0
      %1726 = vmatpush1.bf16.msra.mxu0 %v1700
      %1727 = vmatprep.subr.bf16.mxu0 0
      %1728 = vmatpush2.bf16.msra.mxu0 0
      %1729 = vmatprep.subr.bf16.mxu0 0
      %1730 = vmatpush2.bf16.msra.mxu0 0
      %1731 = vmatprep.subr.bf16.mxu0 0
      %1732 = vmatpush2.bf16.msra.mxu0 0
      %1733 = vmatprep.subr.bf16.mxu0 0
      %1734 = vmatpush2.bf16.msra.mxu0 0
      %1735 = vmatprep.subr.bf16.mxu0 0
      %1736 = vmatpush2.bf16.msra.mxu0 0
      %1737 = vmatprep.subr.bf16.mxu0 0
      %1738 = vmatpush2.bf16.msra.mxu0 0
      %1739 = vmatprep.subr.bf16.mxu0 0
      %1740 = vmatpush2.bf16.msra.mxu0 0
      %1741 = vmatprep.subr.bf16.mxu0 0
      %1742 = vmatpush2.bf16.msra.mxu0 0
      %1743 = vmatprep.mubr.bf16.mxu0 0
      %1744 = vmatmul.mubr.bf16.gmra.mxu0 %v1709
      %v1745 = vpop.f32.mrf.mxu0
      %v1746 = vadd.f32 %v1682, %v1745
      %v1747 = vpop.f32.mrf.mxu0
      %v1748 = vpop.f32.mrf.mxu0
      %v1749 = vpop.f32.mrf.mxu0
      %1750 = vdwg.mxu0
      %v1751 = vlaneseq
      %v1752 = vand.u32 %v1751, 127
      %vm1753 = vcmp.ge.s32.totalorder %v1752, 8
      %v1754 = vmax.f32 %v1746, 0.0
      %v1755 = vsel %vm1753, %v1754, %v1746
      %vm1756 = vcmask 125952
      %1757 = vst.msk [vmem:[%s440] sm:$0xf] %vm1756, %v1755
      %p1758 = scmp.lt.s32.totalorder %s24, 1
      %s1759 = scalar_select %p1758, %s24, 1
      %s1760 = smul.addr %s1759, 4
      %s1761 = scalar_lea.vmem %s13, %s1760
      // Predicated region
      $region73: #{conv_gaussian_encoder.1} parent=71 // pred_check
        %p1762 = pneg %p320
      $region74: #{conv_gaussian_encoder.1} parent=71 // pred_check_branch
        %1764 = sbr.rel (%p1762) target = $region76
      $region75: #{conv_gaussian_encoder.1} parent=71 // pred_region
        _
      $region76: #{conv_gaussian_encoder.1} parent=71 // pred_fallthru
        _
    $region72: #{conv_gaussian_encoder.1} parent=5 // pred_fallthru
      _
    %p1765 = scmp.le.s32.totalorder 2, %s19
    // Predicated region
    $region77: #{conv_gaussian_encoder.1} parent=5 // pred_check
      %p1766 = pneg %p1765
    $region78: #{conv_gaussian_encoder.1} parent=5 // pred_check_branch
      %1768 = sbr.rel (%p1766) target = $region80
    $region79: #{conv_gaussian_encoder.1} parent=5 // pred_region
      %s1769 = ssub.s32 %s19, 2
      // Predicated region
      $region81: #{conv_gaussian_encoder.1} parent=79 // pred_check
        %p1770 = pneg %p326
      $region82: #{conv_gaussian_encoder.1} parent=79 // pred_check_branch
        %1772 = sbr.rel (%p1770) target = $region84
      $region83: #{conv_gaussian_encoder.1} parent=79 // pred_region
        %p1773 = scmp.lt.s32.totalorder %s25, 1
        %s1774 = scalar_select %p1773, %s25, 1
        %s1775 = smul.addr %s1774, 4
        %s1776 = scalar_lea.vmem %s13, %s1775
      $region84: #{conv_gaussian_encoder.1} parent=79 // pred_fallthru
        _
    $region80: #{conv_gaussian_encoder.1} parent=5 // pred_fallthru
      _
  $region6: #{conv_gaussian_encoder.1} parent=0 // loop_footer
    %s23 = sadd.s32 1, %s19
  $region7: #{conv_gaussian_encoder.1} parent=0 // loop_footer_branch
    %18 = sbr.rel target = $region3
  $region8: #{conv_gaussian_encoder.1} parent=0 // loop_exit
    _

</llo_original>
